<compile_context>
chip_gen: v5e
topology: v5e:2x2
jax: 0.10.0
libtpu: 0.0.40
codegen_flags: <defaults>
</compile_context>

<pallas_src>
import math
import functools

import jax
import jax.numpy as jnp
from jax.experimental import pallas as pl
from jax.experimental.pallas import tpu as pltpu


WEIGHT_NAMES = ('wqkv', 'bqkv', 'wo', 'bo', 'ln1_g', 'ln1_b',
                'w1', 'b1', 'w2', 'b2', 'ln2_g', 'ln2_b')


# ----------------------------- kernel helpers ------------------------------

def _layernorm(x, gamma, beta, eps=1e-5):
    # One-pass formulation (E[x], E[x^2]); PyTorch nn.LayerNorm semantics:
    # biased variance, eps inside the sqrt.
    mu = jnp.mean(x, axis=-1, keepdims=True)
    ms = jnp.mean(x * x, axis=-1, keepdims=True)
    var = ms - mu * mu
    return (x - mu) * jax.lax.rsqrt(var + eps) * gamma + beta


# --------------------------- fused encoder kernel ---------------------------

def encoder_stack_kernel(num_heads, weights_resident,
                         x_ref,
                         wqkv_ref, bqkv_ref, wo_ref, bo_ref,
                         ln1g_ref, ln1b_ref,
                         w1_ref, b1_ref, w2_ref, b2_ref,
                         ln2g_ref, ln2b_ref,
                         fng_ref, fnb_ref,
                         o_ref,
                         x_scr):
    l = pl.program_id(1)
    L = pl.num_programs(1)
    # VMEM-resident weights: full-L block, dynamic layer index.  Streamed
    # weights: per-layer (1, ...) block, static index 0.
    wi = l if weights_resident else 0

    # Load the fresh activation block for this batch block at layer 0.
    @pl.when(l == 0)
    def _():
        x_scr[...] = x_ref[...]

    Bt, S, D = x_scr.shape
    H = num_heads
    dh = D // H
    scale = 1.0 / math.sqrt(dh)

    # Fold the batch block into the row (sublane) dimension for dense ops.
    x = x_scr[...].reshape(Bt * S, D)                     # (N, D) f32
    xb = x.astype(jnp.bfloat16)

    # ---- fused QKV projection: one (N, D) @ (D, 3D) MXU pass ----
    qkv = (jnp.dot(xb, wqkv_ref[wi], preferred_element_type=jnp.float32)
           + bqkv_ref[wi])                                # (N, 3D) f32
    q = qkv[:, :D] * scale          # fold 1/sqrt(dh) into q, in f32, pre-cast
    k = qkv[:, D:2 * D]
    v = qkv[:, 2 * D:3 * D]

    q3 = q.reshape(Bt, S, D).astype(jnp.bfloat16)
    k3 = k.reshape(Bt, S, D).astype(jnp.bfloat16)
    v3 = v.reshape(Bt, S, D).astype(jnp.bfloat16)

    # ---- head-batched self-attention (q = k = v = x, no mask) ----
    # Heads folded into the einsum batch dim so score/softmax/PV run as a
    # single batched op each (no H-way unrolled loop of small matmuls).
    def heads_to_batch(t):
        return jnp.concatenate(
            [t[:, :, h * dh:(h + 1) * dh] for h in range(H)], axis=0)

    qh = heads_to_batch(q3)                               # (H*Bt, S, dh)
    kh = heads_to_batch(k3)
    vh = heads_to_batch(v3)

    # TODO(synk): optional attention `mask` path is not implemented (mask=None).
    # TODO(synk): for long S, switch to a key-blocked online softmax so the
    #             (H*Bt, S, S) score tensor is never materialized.
    s = jnp.einsum('bqd,bkd->bqk', qh, kh,
                   preferred_element_type=jnp.float32)    # (H*Bt, S, S)
    s = s - jnp.max(s, axis=-1, keepdims=True)
    p = jnp.exp(s)
    p = p * pl.reciprocal(jnp.sum(p, axis=-1, keepdims=True), approx=True)
    ctx = jnp.einsum('bqk,bkd->bqd', p.astype(jnp.bfloat16), vh,
                     preferred_element_type=jnp.float32)  # (H*Bt, S, dh)

    # Reassemble heads once, then ONE full-K output projection against wo.
    ctx = jnp.concatenate([ctx[h * Bt:(h + 1) * Bt] for h in range(H)],
                          axis=-1).reshape(Bt * S, D)     # (N, D)
    attn = (jnp.dot(ctx.astype(jnp.bfloat16), wo_ref[wi],
                    preferred_element_type=jnp.float32) + bo_ref[wi])

    # ---- residual + norm1 + relu (dropout1 = identity in eval) ----
    x = x + attn
    x = jnp.maximum(_layernorm(x, ln1g_ref[wi], ln1b_ref[wi]), 0.0)

    # ---- feed-forward: Linear -> ReLU -> Linear ----
    # TODO(synk): tile d_ff (extra grid axis / emit_pipeline chunk loop) when
    #             per-layer w1/w2 blocks no longer fit v7x's 64 MiB VMEM.
    h1 = jnp.maximum(
        jnp.dot(x.astype(jnp.bfloat16), w1_ref[wi],
                preferred_element_type=jnp.float32) + b1_ref[wi], 0.0)
    ff = (jnp.dot(h1.astype(jnp.bfloat16), w2_ref[wi],
                  preferred_element_type=jnp.float32) + b2_ref[wi])

    # ---- residual + norm2 + relu (dropout2 = identity in eval) ----
    x = x + ff
    x = jnp.maximum(_layernorm(x, ln2g_ref[wi], ln2b_ref[wi]), 0.0)

    # Carry the activation to the next layer iteration (VMEM-resident).
    x_scr[...] = x.reshape(Bt, S, D)

    # Final LayerNorm folded into the last layer iteration.
    @pl.when(l == L - 1)
    def _():
        y = _layernorm(x, fng_ref[...], fnb_ref[...])
        o_ref[...] = y.reshape(Bt, S, D).astype(o_ref.dtype)


def encoder_stack_call(x, stacked, norm_g, norm_b, num_heads, *, batch_block=None):
    B, S, D = x.shape
    L = stacked['wqkv'].shape[0]
    d_ff = stacked['w1'].shape[-1]
    H = num_heads

    weight_arrays = [stacked[name] for name in WEIGHT_NAMES]

    # ------------------------- VMEM budgeting --------------------------
    try:
        vmem_cap = pltpu.get_tpu_info().vmem_capacity_bytes
    except Exception:
        vmem_cap = 64 * 1024 * 1024            # v7x per-TC VMEM (worst case)
    vmem_budget = (vmem_cap * 3) // 4          # headroom for compiler scratch

    per_layer_w_bytes = sum(int(a.size) * a.dtype.itemsize
                            for a in weight_arrays) // L
    total_w_bytes = per_layer_w_bytes * L

    # Keep the whole stack's weights VMEM-resident when they fit comfortably
    # (constant-index full-L blocks => fetched from HBM once, no per-batch-
    # block re-streaming); otherwise stream per-layer blocks (double-buffered
    # so layer l+1 prefetches behind layer l compute).
    weights_resident = 2 * total_w_bytes <= (2 * vmem_budget) // 5
    weight_buf_bytes = 2 * (total_w_bytes if weights_resident else per_layer_w_bytes)

    # Per-batch-row (Bt == 1) activation footprint estimate, f32, including
    # pipelined x/out buffers, the layer-carry scratch and in-kernel temps.
    per_bt = 5 * S * D * 4                     # x in (x2) + out (x2) + carry
    per_bt += 3 * S * D * (4 + 2)              # qkv f32 + bf16 head copies
    per_bt += 2 * H * S * S * 4                # scores + probs
    per_bt += 2 * S * max(d_ff, D) * 4         # FFN hidden + misc temporaries
    act_budget = max(vmem_budget - weight_buf_bytes, per_bt)

    if batch_block is None:
        bt_cap = max(1, act_budget // per_bt)
        # >= 2 batch blocks whenever B >= 2, so the "parallel" batch axis has
        # work to shard across v7x's two TensorCores; otherwise as large as
        # VMEM allows (minimizes HBM weight re-streaming when streaming).
        batch_block = max(1, min(int(bt_cap), (B + 1) // 2))
    Bt = int(batch_block)

    # Pad B up to a multiple of Bt instead of degrading Bt (batch rows are
    # independent; padded rows are sliced off below).
    nblk = -(-B // Bt)
    Bp = nblk * Bt
    if Bp != B:
        x = jnp.pad(x, ((0, Bp - B), (0, 0), (0, 0)))

    est_bytes = weight_buf_bytes + per_bt * Bt + 8 * D * 4
    vmem_limit = int(min(vmem_budget, max(2 * est_bytes, 32 * 1024 * 1024)))

    # x is read only at l == 0 and out written only at l == L-1: when
    # VMEM-tight, single-buffer them (the one exposed DMA per batch block is
    # hidden under L layers of compute).
    xo_kwargs = {}
    if est_bytes > (3 * vmem_budget) // 4:
        xo_kwargs = dict(pipeline_mode=pl.Buffered(1))

    if weights_resident:
        def layer_spec(a):
            nd = a.ndim
            return pl.BlockSpec(a.shape, lambda b, l, _nd=nd: (0,) * _nd)
    else:
        def layer_spec(a):
            blk = (1,) + a.shape[1:]
            nz = a.ndim - 1
            return pl.BlockSpec(blk, lambda b, l, _nz=nz: (l,) + (0,) * _nz)

    kernel = functools.partial(encoder_stack_kernel, num_heads, weights_resident)
    out = pl.pallas_call(
        kernel,
        out_shape=jax.ShapeDtypeStruct((Bp, S, D), jnp.float32),
        grid=(Bp // Bt, L),
        in_specs=[pl.BlockSpec((Bt, S, D), lambda b, l: (b, 0, 0), **xo_kwargs)]
                 + [layer_spec(a) for a in weight_arrays]
                 + [pl.BlockSpec((1, D), lambda b, l: (0, 0)),
                    pl.BlockSpec((1, D), lambda b, l: (0, 0))],
        out_specs=pl.BlockSpec((Bt, S, D), lambda b, l: (b, 0, 0), **xo_kwargs),
        scratch_shapes=[pltpu.VMEM((Bt, S, D), jnp.float32)],
        compiler_params=pltpu.CompilerParams(
            dimension_semantics=("parallel", "arbitrary"),
            vmem_limit_bytes=vmem_limit),
    )(x, *weight_arrays, norm_g, norm_b)

    return out[:B] if Bp != B else out


# --------------------------- params / glue (JAX) ----------------------------

def sinusoidal_pe(seq_len, d_model):
    pos = jnp.arange(seq_len, dtype=jnp.float32)[:, None]
    i = jnp.arange(0, d_model, 2, dtype=jnp.float32)
    div = jnp.exp(-(jnp.log(10000.0) * i / d_model))
    pe = jnp.zeros((seq_len, d_model), jnp.float32)
    pe = pe.at[:, 0::2].set(jnp.sin(pos * div))
    pe = pe.at[:, 1::2].set(jnp.cos(pos * div))
    return pe


def init_params(key, num_layers, d_model, num_heads, d_ff, input_dim):
    # NOTE: for real deployments choose d_model / d_ff as multiples of 128 and
    # d_head >= 128 so the MXU K/N dims are fully used; toy dims here are for
    # the correctness check only.
    keys = jax.random.split(key, 1 + num_layers)
    emb = jax.random.normal(keys[0], (input_dim, d_model), jnp.float32) * 0.1

    def lin(kk, din, dout):
        kw, kb = jax.random.split(kk)
        w = jax.random.normal(kw, (din, dout), jnp.float32) / math.sqrt(din)
        b = jax.random.normal(kb, (1, dout), jnp.float32) * 0.01
        return w, b

    layers = []
    for l in range(num_layers):
        k = jax.random.split(keys[1 + l], 6)
        wq, bq = lin(k[0], d_model, d_model)
        wk, bk = lin(k[1], d_model, d_model)
        wv, bv = lin(k[2], d_model, d_model)
        wo, bo = lin(k[3], d_model, d_model)
        w1, b1 = lin(k[4], d_model, d_ff)
        w2, b2 = lin(k[5], d_ff, d_model)
        layers.append(dict(
            wqkv=jnp.concatenate([wq, wk, wv], axis=1),   # fused (D, 3D)
            bqkv=jnp.concatenate([bq, bk, bv], axis=1),   # fused (1, 3D)
            wo=wo, bo=bo, w1=w1, b1=b1, w2=w2, b2=b2,
            ln1_g=jnp.ones((1, d_model), jnp.float32),
            ln1_b=jnp.zeros((1, d_model), jnp.float32),
            ln2_g=jnp.ones((1, d_model), jnp.float32),
            ln2_b=jnp.zeros((1, d_model), jnp.float32)))

    # Stack per-layer params along a leading L axis; cast matmul weights to
    # bf16 (MXU-native); keep biases / LN params in f32.
    bf16_names = ('wqkv', 'wo', 'w1', 'w2')
    stacked = {}
    for name in layers[0]:
        arr = jnp.stack([lp[name] for lp in layers], axis=0)
        if name in bf16_names:
            arr = arr.astype(jnp.bfloat16)
        stacked[name] = arr

    return dict(embedding=emb, stacked=stacked,
                norm_g=jnp.ones((1, d_model), jnp.float32),
                norm_b=jnp.zeros((1, d_model), jnp.float32))


def encoder_forward(src, params, num_heads):
    # Embedding gather + positional encoding: plain-JAX glue.
    x = jnp.take(params['embedding'], src, axis=0)          # (B, S, D)
    B, S, D = x.shape
    x = (x + sinusoidal_pe(S, D)[None, :, :]).astype(jnp.float32)
    return encoder_stack_call(x, params['stacked'],
                              params['norm_g'], params['norm_b'], num_heads)


# ---------------------------------- main -------------------------------------

if __name__ == "__main__":
    B, S = 2, 8
    d_model, num_heads, d_ff = 32, 4, 64
    input_dim = 50
    num_layers = 2

    key = jax.random.PRNGKey(0)
    ksrc, kparam = jax.random.split(key)
    src = jax.random.randint(ksrc, (B, S), 0, input_dim)

    params = init_params(kparam, num_layers, d_model, num_heads, d_ff, input_dim)

    out = encoder_forward(src, params, num_heads)
    out = jax.block_until_ready(out)
    assert out.shape == (B, S, d_model) and out.dtype == jnp.float32
    assert bool(jnp.all(jnp.isfinite(out)))
    print("KERNEL_OK")
</pallas_src>

<mosaic_0001>
module attributes {stable_mosaic.version = 11 : i64} {
  func.func @encoder_stack_kernel(%arg0: i32, %arg1: i32, %arg2: memref<1x8x32xf32, #tpu.memory_space<vmem>>, %arg3: memref<2x32x96xbf16, #tpu.memory_space<vmem>>, %arg4: memref<2x1x96xf32, #tpu.memory_space<vmem>>, %arg5: memref<2x32x32xbf16, #tpu.memory_space<vmem>>, %arg6: memref<2x1x32xf32, #tpu.memory_space<vmem>>, %arg7: memref<2x1x32xf32, #tpu.memory_space<vmem>>, %arg8: memref<2x1x32xf32, #tpu.memory_space<vmem>>, %arg9: memref<2x32x64xbf16, #tpu.memory_space<vmem>>, %arg10: memref<2x1x64xf32, #tpu.memory_space<vmem>>, %arg11: memref<2x64x32xbf16, #tpu.memory_space<vmem>>, %arg12: memref<2x1x32xf32, #tpu.memory_space<vmem>>, %arg13: memref<2x1x32xf32, #tpu.memory_space<vmem>>, %arg14: memref<2x1x32xf32, #tpu.memory_space<vmem>>, %arg15: memref<1x32xf32, #tpu.memory_space<vmem>>, %arg16: memref<1x32xf32, #tpu.memory_space<vmem>>, %arg17: memref<1x8x32xf32, #tpu.memory_space<vmem>>, %arg18: memref<1x8x32xf32, #tpu.memory_space<vmem>>) attributes {dimension_semantics = [#tpu.dimension_semantics<parallel>, #tpu.dimension_semantics<arbitrary>], iteration_bounds = array<i64: 2, 2>, scalar_prefetch = 0 : i64, scratch_operands = 1 : i64, tpu.core_type = #tpu.core_type<tc>, window_params = [{transform_indices = @transform_0, window_bounds = array<i64: 1, 8, 32>}, {pipeline_mode = #tpu.pipeline_mode<synchronous>, transform_indices = @transform_1, window_bounds = array<i64: 2, 32, 96>}, {pipeline_mode = #tpu.pipeline_mode<synchronous>, transform_indices = @transform_2, window_bounds = array<i64: 2, 1, 96>}, {pipeline_mode = #tpu.pipeline_mode<synchronous>, transform_indices = @transform_3, window_bounds = array<i64: 2, 32, 32>}, {pipeline_mode = #tpu.pipeline_mode<synchronous>, transform_indices = @transform_4, window_bounds = array<i64: 2, 1, 32>}, {pipeline_mode = #tpu.pipeline_mode<synchronous>, transform_indices = @transform_5, window_bounds = array<i64: 2, 1, 32>}, {pipeline_mode = #tpu.pipeline_mode<synchronous>, transform_indices = @transform_6, window_bounds = array<i64: 2, 1, 32>}, {pipeline_mode = #tpu.pipeline_mode<synchronous>, transform_indices = @transform_7, window_bounds = array<i64: 2, 32, 64>}, {pipeline_mode = #tpu.pipeline_mode<synchronous>, transform_indices = @transform_8, window_bounds = array<i64: 2, 1, 64>}, {pipeline_mode = #tpu.pipeline_mode<synchronous>, transform_indices = @transform_9, window_bounds = array<i64: 2, 64, 32>}, {pipeline_mode = #tpu.pipeline_mode<synchronous>, transform_indices = @transform_10, window_bounds = array<i64: 2, 1, 32>}, {pipeline_mode = #tpu.pipeline_mode<synchronous>, transform_indices = @transform_11, window_bounds = array<i64: 2, 1, 32>}, {pipeline_mode = #tpu.pipeline_mode<synchronous>, transform_indices = @transform_12, window_bounds = array<i64: 2, 1, 32>}, {pipeline_mode = #tpu.pipeline_mode<synchronous>, transform_indices = @transform_13, window_bounds = array<i64: 1, 32>}, {pipeline_mode = #tpu.pipeline_mode<synchronous>, transform_indices = @transform_14, window_bounds = array<i64: 1, 32>}, {transform_indices = @transform_15, window_bounds = array<i64: 1, 8, 32>}]} {
    %c0_i32 = arith.constant 0 : i32
    %0 = arith.cmpi eq, %arg1, %c0_i32 : i32
    %1 = arith.extui %0 : i1 to i32
    %c0_i32_0 = arith.constant 0 : i32
    %2 = arith.cmpi ne, %1, %c0_i32_0 : i32
    scf.if %2 {
      %c0_52 = arith.constant 0 : index
      %c0_53 = arith.constant 0 : index
      %c0_54 = arith.constant 0 : index
      %159 = vector.load %arg2[%c0_52, %c0_53, %c0_54] : memref<1x8x32xf32, #tpu.memory_space<vmem>>, vector<1x8x32xf32>
      %c0_55 = arith.constant 0 : index
      %c0_56 = arith.constant 0 : index
      %c0_57 = arith.constant 0 : index
      %160 = vector.load %arg18[%c0_55, %c0_56, %c0_57] : memref<1x8x32xf32, #tpu.memory_space<vmem>>, vector<1x8x32xf32>
      tpu.vector_store %arg18[%c0_55, %c0_56, %c0_57], %159 {strides = array<i32>} : memref<1x8x32xf32, #tpu.memory_space<vmem>>, vector<1x8x32xf32>,
    } else {
    }
    %c0 = arith.constant 0 : index
    %c0_1 = arith.constant 0 : index
    %c0_2 = arith.constant 0 : index
    %3 = vector.load %arg18[%c0, %c0_1, %c0_2] : memref<1x8x32xf32, #tpu.memory_space<vmem>>, vector<1x8x32xf32>
    %4 = vector.shape_cast %3 : vector<1x8x32xf32> to vector<8x32xf32>
    %5 = arith.truncf %4 : vector<8x32xf32> to vector<8x32xbf16>
    %6 = arith.index_cast %arg1 : i32 to index
    %c0_3 = arith.constant 0 : index
    %c0_4 = arith.constant 0 : index
    %7 = vector.load %arg3[%6, %c0_3, %c0_4] : memref<2x32x96xbf16, #tpu.memory_space<vmem>>, vector<1x32x96xbf16>
    %8 = vector.shape_cast %7 : vector<1x32x96xbf16> to vector<32x96xbf16>
    %cst = arith.constant dense<0.000000e+00> : vector<8x96xf32>
    %9 = tpu.matmul %5, %8, %cst {dimension_numbers = #tpu.dot_dimension_numbers<[1], [0], [0], [1], [0, 0, 1, 1], [], []>} : vector<8x32xbf16>, vector<32x96xbf16>, vector<8x96xf32> -> vector<8x96xf32>
    %10 = arith.index_cast %arg1 : i32 to index
    %c0_5 = arith.constant 0 : index
    %c0_6 = arith.constant 0 : index
    %11 = vector.load %arg4[%10, %c0_5, %c0_6] : memref<2x1x96xf32, #tpu.memory_space<vmem>>, vector<1x1x96xf32>
    %12 = vector.shape_cast %11 : vector<1x1x96xf32> to vector<1x96xf32>
    %13 = vector.broadcast %12 : vector<1x96xf32> to vector<8x96xf32>
    %14 = arith.addf %9, %13 : vector<8x96xf32>
    %15 = vector.extract_strided_slice %14 {offsets = [0, 0], sizes = [8, 32], strides = [1, 1]} : vector<8x96xf32> to vector<8x32xf32>
    %cst_7 = arith.constant 0.353553385 : f32
    %16 = vector.broadcast %cst_7 : f32 to vector<8x32xf32>
    %17 = arith.mulf %15, %16 : vector<8x32xf32>
    %18 = vector.extract_strided_slice %14 {offsets = [0, 32], sizes = [8, 32], strides = [1, 1]} : vector<8x96xf32> to vector<8x32xf32>
    %19 = vector.extract_strided_slice %14 {offsets = [0, 64], sizes = [8, 32], strides = [1, 1]} : vector<8x96xf32> to vector<8x32xf32>
    %20 = vector.shape_cast %17 : vector<8x32xf32> to vector<1x8x32xf32>
    %21 = arith.truncf %20 : vector<1x8x32xf32> to vector<1x8x32xbf16>
    %22 = vector.shape_cast %18 : vector<8x32xf32> to vector<1x8x32xf32>
    %23 = arith.truncf %22 : vector<1x8x32xf32> to vector<1x8x32xbf16>
    %24 = vector.shape_cast %19 : vector<8x32xf32> to vector<1x8x32xf32>
    %25 = arith.truncf %24 : vector<1x8x32xf32> to vector<1x8x32xbf16>
    %26 = vector.extract_strided_slice %21 {offsets = [0, 0, 0], sizes = [1, 8, 8], strides = [1, 1, 1]} : vector<1x8x32xbf16> to vector<1x8x8xbf16>
    %27 = vector.extract_strided_slice %21 {offsets = [0, 0, 8], sizes = [1, 8, 8], strides = [1, 1, 1]} : vector<1x8x32xbf16> to vector<1x8x8xbf16>
    %28 = vector.extract_strided_slice %21 {offsets = [0, 0, 16], sizes = [1, 8, 8], strides = [1, 1, 1]} : vector<1x8x32xbf16> to vector<1x8x8xbf16>
    %29 = vector.extract_strided_slice %21 {offsets = [0, 0, 24], sizes = [1, 8, 8], strides = [1, 1, 1]} : vector<1x8x32xbf16> to vector<1x8x8xbf16>
    %30 = tpu.concatenate %26, %27, %28, %29 in 0 : vector<1x8x8xbf16>, vector<1x8x8xbf16>, vector<1x8x8xbf16>, vector<1x8x8xbf16> -> vector<4x8x8xbf16>
    %31 = vector.extract_strided_slice %23 {offsets = [0, 0, 0], sizes = [1, 8, 8], strides = [1, 1, 1]} : vector<1x8x32xbf16> to vector<1x8x8xbf16>
    %32 = vector.extract_strided_slice %23 {offsets = [0, 0, 8], sizes = [1, 8, 8], strides = [1, 1, 1]} : vector<1x8x32xbf16> to vector<1x8x8xbf16>
    %33 = vector.extract_strided_slice %23 {offsets = [0, 0, 16], sizes = [1, 8, 8], strides = [1, 1, 1]} : vector<1x8x32xbf16> to vector<1x8x8xbf16>
    %34 = vector.extract_strided_slice %23 {offsets = [0, 0, 24], sizes = [1, 8, 8], strides = [1, 1, 1]} : vector<1x8x32xbf16> to vector<1x8x8xbf16>
    %35 = tpu.concatenate %31, %32, %33, %34 in 0 : vector<1x8x8xbf16>, vector<1x8x8xbf16>, vector<1x8x8xbf16>, vector<1x8x8xbf16> -> vector<4x8x8xbf16>
    %36 = vector.extract_strided_slice %25 {offsets = [0, 0, 0], sizes = [1, 8, 8], strides = [1, 1, 1]} : vector<1x8x32xbf16> to vector<1x8x8xbf16>
    %37 = vector.extract_strided_slice %25 {offsets = [0, 0, 8], sizes = [1, 8, 8], strides = [1, 1, 1]} : vector<1x8x32xbf16> to vector<1x8x8xbf16>
    %38 = vector.extract_strided_slice %25 {offsets = [0, 0, 16], sizes = [1, 8, 8], strides = [1, 1, 1]} : vector<1x8x32xbf16> to vector<1x8x8xbf16>
    %39 = vector.extract_strided_slice %25 {offsets = [0, 0, 24], sizes = [1, 8, 8], strides = [1, 1, 1]} : vector<1x8x32xbf16> to vector<1x8x8xbf16>
    %40 = tpu.concatenate %36, %37, %38, %39 in 0 : vector<1x8x8xbf16>, vector<1x8x8xbf16>, vector<1x8x8xbf16>, vector<1x8x8xbf16> -> vector<4x8x8xbf16>
    "tpu.trace_start"() <{level = 10 : i32, message = "bqd,bkd->bqk"}> : () -> ()
    %cst_8 = arith.constant dense<0.000000e+00> : vector<4x8x8xf32>
    %41 = tpu.matmul %30, %35, %cst_8 {dimension_numbers = #tpu.dot_dimension_numbers<[2], [2], [1], [1], [0, 0, 0, 1, 1, 1], [0], [0]>} : vector<4x8x8xbf16>, vector<4x8x8xbf16>, vector<4x8x8xf32> -> vector<4x8x8xf32>
    "tpu.trace_stop"() : () -> ()
    %cst_9 = arith.constant dense<0xFF800000> : vector<4x8xf32>
    %42 = vector.multi_reduction <maximumf>, %41, %cst_9 [2] : vector<4x8x8xf32> to vector<4x8xf32>
    %43 = vector.shape_cast %42 : vector<4x8xf32> to vector<4x8x1xf32>
    %44 = vector.broadcast %43 : vector<4x8x1xf32> to vector<4x8x8xf32>
    %45 = arith.subf %41, %44 : vector<4x8x8xf32>
    %46 = math.exp %45 : vector<4x8x8xf32>
    %cst_10 = arith.constant dense<0.000000e+00> : vector<4x8xf32>
    %47 = vector.multi_reduction <add>, %46, %cst_10 [2] : vector<4x8x8xf32> to vector<4x8xf32>
    %48 = vector.shape_cast %47 : vector<4x8xf32> to vector<4x8x1xf32>
    %49 = tpu.reciprocal %48 {approx = true} : vector<4x8x1xf32> -> vector<4x8x1xf32>
    %50 = vector.broadcast %49 : vector<4x8x1xf32> to vector<4x8x8xf32>
    %51 = arith.mulf %46, %50 : vector<4x8x8xf32>
    %52 = arith.truncf %51 : vector<4x8x8xf32> to vector<4x8x8xbf16>
    "tpu.trace_start"() <{level = 10 : i32, message = "bqk,bkd->bqd"}> : () -> ()
    %cst_11 = arith.constant dense<0.000000e+00> : vector<4x8x8xf32>
    %53 = tpu.matmul %52, %40, %cst_11 {dimension_numbers = #tpu.dot_dimension_numbers<[2], [1], [1], [2], [0, 0, 0, 1, 1, 2], [0], [0]>} : vector<4x8x8xbf16>, vector<4x8x8xbf16>, vector<4x8x8xf32> -> vector<4x8x8xf32>
    "tpu.trace_stop"() : () -> ()
    %54 = vector.extract_strided_slice %53 {offsets = [0, 0, 0], sizes = [1, 8, 8], strides = [1, 1, 1]} : vector<4x8x8xf32> to vector<1x8x8xf32>
    %55 = vector.extract_strided_slice %53 {offsets = [1, 0, 0], sizes = [1, 8, 8], strides = [1, 1, 1]} : vector<4x8x8xf32> to vector<1x8x8xf32>
    %56 = vector.extract_strided_slice %53 {offsets = [2, 0, 0], sizes = [1, 8, 8], strides = [1, 1, 1]} : vector<4x8x8xf32> to vector<1x8x8xf32>
    %57 = vector.extract_strided_slice %53 {offsets = [3, 0, 0], sizes = [1, 8, 8], strides = [1, 1, 1]} : vector<4x8x8xf32> to vector<1x8x8xf32>
    %58 = tpu.concatenate %54, %55, %56, %57 in 2 : vector<1x8x8xf32>, vector<1x8x8xf32>, vector<1x8x8xf32>, vector<1x8x8xf32> -> vector<1x8x32xf32>
    %59 = vector.shape_cast %58 : vector<1x8x32xf32> to vector<8x32xf32>
    %60 = arith.truncf %59 : vector<8x32xf32> to vector<8x32xbf16>
    %61 = arith.index_cast %arg1 : i32 to index
    %c0_12 = arith.constant 0 : index
    %c0_13 = arith.constant 0 : index
    %62 = vector.load %arg5[%61, %c0_12, %c0_13] : memref<2x32x32xbf16, #tpu.memory_space<vmem>>, vector<1x32x32xbf16>
    %63 = vector.shape_cast %62 : vector<1x32x32xbf16> to vector<32x32xbf16>
    %cst_14 = arith.constant dense<0.000000e+00> : vector<8x32xf32>
    %64 = tpu.matmul %60, %63, %cst_14 {dimension_numbers = #tpu.dot_dimension_numbers<[1], [0], [0], [1], [0, 0, 1, 1], [], []>} : vector<8x32xbf16>, vector<32x32xbf16>, vector<8x32xf32> -> vector<8x32xf32>
    %65 = arith.index_cast %arg1 : i32 to index
    %c0_15 = arith.constant 0 : index
    %c0_16 = arith.constant 0 : index
    %66 = vector.load %arg6[%65, %c0_15, %c0_16] : memref<2x1x32xf32, #tpu.memory_space<vmem>>, vector<1x1x32xf32>
    %67 = vector.shape_cast %66 : vector<1x1x32xf32> to vector<1x32xf32>
    %68 = vector.broadcast %67 : vector<1x32xf32> to vector<8x32xf32>
    %69 = arith.addf %64, %68 : vector<8x32xf32>
    %70 = arith.addf %4, %69 : vector<8x32xf32>
    %71 = arith.index_cast %arg1 : i32 to index
    %c0_17 = arith.constant 0 : index
    %c0_18 = arith.constant 0 : index
    %72 = vector.load %arg7[%71, %c0_17, %c0_18] : memref<2x1x32xf32, #tpu.memory_space<vmem>>, vector<1x1x32xf32>
    %73 = vector.shape_cast %72 : vector<1x1x32xf32> to vector<1x32xf32>
    %74 = arith.index_cast %arg1 : i32 to index
    %c0_19 = arith.constant 0 : index
    %c0_20 = arith.constant 0 : index
    %75 = vector.load %arg8[%74, %c0_19, %c0_20] : memref<2x1x32xf32, #tpu.memory_space<vmem>>, vector<1x1x32xf32>
    %76 = vector.shape_cast %75 : vector<1x1x32xf32> to vector<1x32xf32>
    %cst_21 = arith.constant dense<0.000000e+00> : vector<8xf32>
    %77 = vector.multi_reduction <add>, %70, %cst_21 [1] : vector<8x32xf32> to vector<8xf32>
    %78 = vector.shape_cast %77 : vector<8xf32> to vector<8x1xf32>
    %cst_22 = arith.constant 3.200000e+01 : f32
    %79 = vector.broadcast %cst_22 : f32 to vector<8x1xf32>
    %80 = arith.divf %78, %79 : vector<8x1xf32>
    %81 = arith.mulf %70, %70 : vector<8x32xf32>
    %cst_23 = arith.constant dense<0.000000e+00> : vector<8xf32>
    %82 = vector.multi_reduction <add>, %81, %cst_23 [1] : vector<8x32xf32> to vector<8xf32>
    %83 = vector.shape_cast %82 : vector<8xf32> to vector<8x1xf32>
    %cst_24 = arith.constant 3.200000e+01 : f32
    %84 = vector.broadcast %cst_24 : f32 to vector<8x1xf32>
    %85 = arith.divf %83, %84 : vector<8x1xf32>
    %86 = arith.mulf %80, %80 : vector<8x1xf32>
    %87 = arith.subf %85, %86 : vector<8x1xf32>
    %88 = vector.broadcast %80 : vector<8x1xf32> to vector<8x32xf32>
    %89 = arith.subf %70, %88 : vector<8x32xf32>
    %cst_25 = arith.constant 9.99999974E-6 : f32
    %90 = vector.broadcast %cst_25 : f32 to vector<8x1xf32>
    %91 = arith.addf %87, %90 : vector<8x1xf32>
    %92 = math.rsqrt %91 : vector<8x1xf32>
    %93 = vector.broadcast %92 : vector<8x1xf32> to vector<8x32xf32>
    %94 = arith.mulf %89, %93 : vector<8x32xf32>
    %95 = vector.broadcast %73 : vector<1x32xf32> to vector<8x32xf32>
    %96 = arith.mulf %94, %95 : vector<8x32xf32>
    %97 = vector.broadcast %76 : vector<1x32xf32> to vector<8x32xf32>
    %98 = arith.addf %96, %97 : vector<8x32xf32>
    %cst_26 = arith.constant 0.000000e+00 : f32
    %99 = vector.broadcast %cst_26 : f32 to vector<8x32xf32>
    %100 = arith.maximumf %98, %99 : vector<8x32xf32>
    %101 = arith.truncf %100 : vector<8x32xf32> to vector<8x32xbf16>
    %102 = arith.index_cast %arg1 : i32 to index
    %c0_27 = arith.constant 0 : index
    %c0_28 = arith.constant 0 : index
    %103 = vector.load %arg9[%102, %c0_27, %c0_28] : memref<2x32x64xbf16, #tpu.memory_space<vmem>>, vector<1x32x64xbf16>
    %104 = vector.shape_cast %103 : vector<1x32x64xbf16> to vector<32x64xbf16>
    %cst_29 = arith.constant dense<0.000000e+00> : vector<8x64xf32>
    %105 = tpu.matmul %101, %104, %cst_29 {dimension_numbers = #tpu.dot_dimension_numbers<[1], [0], [0], [1], [0, 0, 1, 1], [], []>} : vector<8x32xbf16>, vector<32x64xbf16>, vector<8x64xf32> -> vector<8x64xf32>
    %106 = arith.index_cast %arg1 : i32 to index
    %c0_30 = arith.constant 0 : index
    %c0_31 = arith.constant 0 : index
    %107 = vector.load %arg10[%106, %c0_30, %c0_31] : memref<2x1x64xf32, #tpu.memory_space<vmem>>, vector<1x1x64xf32>
    %108 = vector.shape_cast %107 : vector<1x1x64xf32> to vector<1x64xf32>
    %109 = vector.broadcast %108 : vector<1x64xf32> to vector<8x64xf32>
    %110 = arith.addf %105, %109 : vector<8x64xf32>
    %cst_32 = arith.constant 0.000000e+00 : f32
    %111 = vector.broadcast %cst_32 : f32 to vector<8x64xf32>
    %112 = arith.maximumf %110, %111 : vector<8x64xf32>
    %113 = arith.truncf %112 : vector<8x64xf32> to vector<8x64xbf16>
    %114 = arith.index_cast %arg1 : i32 to index
    %c0_33 = arith.constant 0 : index
    %c0_34 = arith.constant 0 : index
    %115 = vector.load %arg11[%114, %c0_33, %c0_34] : memref<2x64x32xbf16, #tpu.memory_space<vmem>>, vector<1x64x32xbf16>
    %116 = vector.shape_cast %115 : vector<1x64x32xbf16> to vector<64x32xbf16>
    %cst_35 = arith.constant dense<0.000000e+00> : vector<8x32xf32>
    %117 = tpu.matmul %113, %116, %cst_35 {dimension_numbers = #tpu.dot_dimension_numbers<[1], [0], [0], [1], [0, 0, 1, 1], [], []>} : vector<8x64xbf16>, vector<64x32xbf16>, vector<8x32xf32> -> vector<8x32xf32>
    %118 = arith.index_cast %arg1 : i32 to index
    %c0_36 = arith.constant 0 : index
    %c0_37 = arith.constant 0 : index
    %119 = vector.load %arg12[%118, %c0_36, %c0_37] : memref<2x1x32xf32, #tpu.memory_space<vmem>>, vector<1x1x32xf32>
    %120 = vector.shape_cast %119 : vector<1x1x32xf32> to vector<1x32xf32>
    %121 = vector.broadcast %120 : vector<1x32xf32> to vector<8x32xf32>
    %122 = arith.addf %117, %121 : vector<8x32xf32>
    %123 = arith.addf %100, %122 : vector<8x32xf32>
    %124 = arith.index_cast %arg1 : i32 to index
    %c0_38 = arith.constant 0 : index
    %c0_39 = arith.constant 0 : index
    %125 = vector.load %arg13[%124, %c0_38, %c0_39] : memref<2x1x32xf32, #tpu.memory_space<vmem>>, vector<1x1x32xf32>
    %126 = vector.shape_cast %125 : vector<1x1x32xf32> to vector<1x32xf32>
    %127 = arith.index_cast %arg1 : i32 to index
    %c0_40 = arith.constant 0 : index
    %c0_41 = arith.constant 0 : index
    %128 = vector.load %arg14[%127, %c0_40, %c0_41] : memref<2x1x32xf32, #tpu.memory_space<vmem>>, vector<1x1x32xf32>
    %129 = vector.shape_cast %128 : vector<1x1x32xf32> to vector<1x32xf32>
    %cst_42 = arith.constant dense<0.000000e+00> : vector<8xf32>
    %130 = vector.multi_reduction <add>, %123, %cst_42 [1] : vector<8x32xf32> to vector<8xf32>
    %131 = vector.shape_cast %130 : vector<8xf32> to vector<8x1xf32>
    %cst_43 = arith.constant 3.200000e+01 : f32
    %132 = vector.broadcast %cst_43 : f32 to vector<8x1xf32>
    %133 = arith.divf %131, %132 : vector<8x1xf32>
    %134 = arith.mulf %123, %123 : vector<8x32xf32>
    %cst_44 = arith.constant dense<0.000000e+00> : vector<8xf32>
    %135 = vector.multi_reduction <add>, %134, %cst_44 [1] : vector<8x32xf32> to vector<8xf32>
    %136 = vector.shape_cast %135 : vector<8xf32> to vector<8x1xf32>
    %cst_45 = arith.constant 3.200000e+01 : f32
    %137 = vector.broadcast %cst_45 : f32 to vector<8x1xf32>
    %138 = arith.divf %136, %137 : vector<8x1xf32>
    %139 = arith.mulf %133, %133 : vector<8x1xf32>
    %140 = arith.subf %138, %139 : vector<8x1xf32>
    %141 = vector.broadcast %133 : vector<8x1xf32> to vector<8x32xf32>
    %142 = arith.subf %123, %141 : vector<8x32xf32>
    %cst_46 = arith.constant 9.99999974E-6 : f32
    %143 = vector.broadcast %cst_46 : f32 to vector<8x1xf32>
    %144 = arith.addf %140, %143 : vector<8x1xf32>
    %145 = math.rsqrt %144 : vector<8x1xf32>
    %146 = vector.broadcast %145 : vector<8x1xf32> to vector<8x32xf32>
    %147 = arith.mulf %142, %146 : vector<8x32xf32>
    %148 = vector.broadcast %126 : vector<1x32xf32> to vector<8x32xf32>
    %149 = arith.mulf %147, %148 : vector<8x32xf32>
    %150 = vector.broadcast %129 : vector<1x32xf32> to vector<8x32xf32>
    %151 = arith.addf %149, %150 : vector<8x32xf32>
    %cst_47 = arith.constant 0.000000e+00 : f32
    %152 = vector.broadcast %cst_47 : f32 to vector<8x32xf32>
    %153 = arith.maximumf %151, %152 : vector<8x32xf32>
    %154 = vector.shape_cast %153 : vector<8x32xf32> to vector<1x8x32xf32>
    %c0_48 = arith.constant 0 : index
    %c0_49 = arith.constant 0 : index
    %c0_50 = arith.constant 0 : index
    %155 = vector.load %arg18[%c0_48, %c0_49, %c0_50] : memref<1x8x32xf32, #tpu.memory_space<vmem>>, vector<1x8x32xf32>
    tpu.vector_store %arg18[%c0_48, %c0_49, %c0_50], %154 {strides = array<i32>} : memref<1x8x32xf32, #tpu.memory_space<vmem>>, vector<1x8x32xf32>,
    %c1_i32 = arith.constant 1 : i32
    %156 = arith.cmpi eq, %arg1, %c1_i32 : i32
    %157 = arith.extui %156 : i1 to i32
    %c0_i32_51 = arith.constant 0 : i32
    %158 = arith.cmpi ne, %157, %c0_i32_51 : i32
    scf.if %158 {
      %c0_52 = arith.constant 0 : index
      %c0_53 = arith.constant 0 : index
      %159 = vector.load %arg15[%c0_52, %c0_53] : memref<1x32xf32, #tpu.memory_space<vmem>>, vector<1x32xf32>
      %c0_54 = arith.constant 0 : index
      %c0_55 = arith.constant 0 : index
      %160 = vector.load %arg16[%c0_54, %c0_55] : memref<1x32xf32, #tpu.memory_space<vmem>>, vector<1x32xf32>
      %cst_56 = arith.constant dense<0.000000e+00> : vector<8xf32>
      %161 = vector.multi_reduction <add>, %153, %cst_56 [1] : vector<8x32xf32> to vector<8xf32>
      %162 = vector.shape_cast %161 : vector<8xf32> to vector<8x1xf32>
      %cst_57 = arith.constant 3.200000e+01 : f32
      %163 = vector.broadcast %cst_57 : f32 to vector<8x1xf32>
      %164 = arith.divf %162, %163 : vector<8x1xf32>
      %165 = arith.mulf %153, %153 : vector<8x32xf32>
      %cst_58 = arith.constant dense<0.000000e+00> : vector<8xf32>
      %166 = vector.multi_reduction <add>, %165, %cst_58 [1] : vector<8x32xf32> to vector<8xf32>
      %167 = vector.shape_cast %166 : vector<8xf32> to vector<8x1xf32>
      %cst_59 = arith.constant 3.200000e+01 : f32
      %168 = vector.broadcast %cst_59 : f32 to vector<8x1xf32>
      %169 = arith.divf %167, %168 : vector<8x1xf32>
      %170 = arith.mulf %164, %164 : vector<8x1xf32>
      %171 = arith.subf %169, %170 : vector<8x1xf32>
      %172 = vector.broadcast %164 : vector<8x1xf32> to vector<8x32xf32>
      %173 = arith.subf %153, %172 : vector<8x32xf32>
      %cst_60 = arith.constant 9.99999974E-6 : f32
      %174 = vector.broadcast %cst_60 : f32 to vector<8x1xf32>
      %175 = arith.addf %171, %174 : vector<8x1xf32>
      %176 = math.rsqrt %175 : vector<8x1xf32>
      %177 = vector.broadcast %176 : vector<8x1xf32> to vector<8x32xf32>
      %178 = arith.mulf %173, %177 : vector<8x32xf32>
      %179 = vector.broadcast %159 : vector<1x32xf32> to vector<8x32xf32>
      %180 = arith.mulf %178, %179 : vector<8x32xf32>
      %181 = vector.broadcast %160 : vector<1x32xf32> to vector<8x32xf32>
      %182 = arith.addf %180, %181 : vector<8x32xf32>
      %183 = vector.shape_cast %182 : vector<8x32xf32> to vector<1x8x32xf32>
      %c0_61 = arith.constant 0 : index
      %c0_62 = arith.constant 0 : index
      %c0_63 = arith.constant 0 : index
      %184 = vector.load %arg17[%c0_61, %c0_62, %c0_63] : memref<1x8x32xf32, #tpu.memory_space<vmem>>, vector<1x8x32xf32>
      tpu.vector_store %arg17[%c0_61, %c0_62, %c0_63], %183 {strides = array<i32>} : memref<1x8x32xf32, #tpu.memory_space<vmem>>, vector<1x8x32xf32>,
    } else {
    }
    return
  }
  func.func @transform_0(%arg0: i32, %arg1: i32) -> (i32, i32, i32) {
    %c0_i32 = arith.constant 0 : i32
    %c0_i32_0 = arith.constant 0 : i32
    %c0_i32_1 = arith.constant 0 : i32
    return %arg0, %c0_i32, %c0_i32_0 : i32, i32, i32
  }
  func.func @transform_1(%arg0: i32, %arg1: i32) -> (i32, i32, i32) {
    %c0_i32 = arith.constant 0 : i32
    %c0_i32_0 = arith.constant 0 : i32
    %c0_i32_1 = arith.constant 0 : i32
    %c0_i32_2 = arith.constant 0 : i32
    return %c0_i32, %c0_i32_0, %c0_i32_1 : i32, i32, i32
  }
  func.func @transform_2(%arg0: i32, %arg1: i32) -> (i32, i32, i32) {
    %c0_i32 = arith.constant 0 : i32
    %c0_i32_0 = arith.constant 0 : i32
    %c0_i32_1 = arith.constant 0 : i32
    %c0_i32_2 = arith.constant 0 : i32
    return %c0_i32, %c0_i32_0, %c0_i32_1 : i32, i32, i32
  }
  func.func @transform_3(%arg0: i32, %arg1: i32) -> (i32, i32, i32) {
    %c0_i32 = arith.constant 0 : i32
    %c0_i32_0 = arith.constant 0 : i32
    %c0_i32_1 = arith.constant 0 : i32
    %c0_i32_2 = arith.constant 0 : i32
    return %c0_i32, %c0_i32_0, %c0_i32_1 : i32, i32, i32
  }
  func.func @transform_4(%arg0: i32, %arg1: i32) -> (i32, i32, i32) {
    %c0_i32 = arith.constant 0 : i32
    %c0_i32_0 = arith.constant 0 : i32
    %c0_i32_1 = arith.constant 0 : i32
    %c0_i32_2 = arith.constant 0 : i32
    return %c0_i32, %c0_i32_0, %c0_i32_1 : i32, i32, i32
  }
  func.func @transform_5(%arg0: i32, %arg1: i32) -> (i32, i32, i32) {
    %c0_i32 = arith.constant 0 : i32
    %c0_i32_0 = arith.constant 0 : i32
    %c0_i32_1 = arith.constant 0 : i32
    %c0_i32_2 = arith.constant 0 : i32
    return %c0_i32, %c0_i32_0, %c0_i32_1 : i32, i32, i32
  }
  func.func @transform_6(%arg0: i32, %arg1: i32) -> (i32, i32, i32) {
    %c0_i32 = arith.constant 0 : i32
    %c0_i32_0 = arith.constant 0 : i32
    %c0_i32_1 = arith.constant 0 : i32
    %c0_i32_2 = arith.constant 0 : i32
    return %c0_i32, %c0_i32_0, %c0_i32_1 : i32, i32, i32
  }
  func.func @transform_7(%arg0: i32, %arg1: i32) -> (i32, i32, i32) {
    %c0_i32 = arith.constant 0 : i32
    %c0_i32_0 = arith.constant 0 : i32
    %c0_i32_1 = arith.constant 0 : i32
    %c0_i32_2 = arith.constant 0 : i32
    return %c0_i32, %c0_i32_0, %c0_i32_1 : i32, i32, i32
  }
  func.func @transform_8(%arg0: i32, %arg1: i32) -> (i32, i32, i32) {
    %c0_i32 = arith.constant 0 : i32
    %c0_i32_0 = arith.constant 0 : i32
    %c0_i32_1 = arith.constant 0 : i32
    %c0_i32_2 = arith.constant 0 : i32
    return %c0_i32, %c0_i32_0, %c0_i32_1 : i32, i32, i32
  }
  func.func @transform_9(%arg0: i32, %arg1: i32) -> (i32, i32, i32) {
    %c0_i32 = arith.constant 0 : i32
    %c0_i32_0 = arith.constant 0 : i32
    %c0_i32_1 = arith.constant 0 : i32
    %c0_i32_2 = arith.constant 0 : i32
    return %c0_i32, %c0_i32_0, %c0_i32_1 : i32, i32, i32
  }
  func.func @transform_10(%arg0: i32, %arg1: i32) -> (i32, i32, i32) {
    %c0_i32 = arith.constant 0 : i32
    %c0_i32_0 = arith.constant 0 : i32
    %c0_i32_1 = arith.constant 0 : i32
    %c0_i32_2 = arith.constant 0 : i32
    return %c0_i32, %c0_i32_0, %c0_i32_1 : i32, i32, i32
  }
  func.func @transform_11(%arg0: i32, %arg1: i32) -> (i32, i32, i32) {
    %c0_i32 = arith.constant 0 : i32
    %c0_i32_0 = arith.constant 0 : i32
    %c0_i32_1 = arith.constant 0 : i32
    %c0_i32_2 = arith.constant 0 : i32
    return %c0_i32, %c0_i32_0, %c0_i32_1 : i32, i32, i32
  }
  func.func @transform_12(%arg0: i32, %arg1: i32) -> (i32, i32, i32) {
    %c0_i32 = arith.constant 0 : i32
    %c0_i32_0 = arith.constant 0 : i32
    %c0_i32_1 = arith.constant 0 : i32
    %c0_i32_2 = arith.constant 0 : i32
    return %c0_i32, %c0_i32_0, %c0_i32_1 : i32, i32, i32
  }
  func.func @transform_13(%arg0: i32, %arg1: i32) -> (i32, i32) {
    %c0_i32 = arith.constant 0 : i32
    %c0_i32_0 = arith.constant 0 : i32
    %c0_i32_1 = arith.constant 0 : i32
    return %c0_i32, %c0_i32_0 : i32, i32
  }
  func.func @transform_14(%arg0: i32, %arg1: i32) -> (i32, i32) {
    %c0_i32 = arith.constant 0 : i32
    %c0_i32_0 = arith.constant 0 : i32
    %c0_i32_1 = arith.constant 0 : i32
    return %c0_i32, %c0_i32_0 : i32, i32
  }
  func.func @transform_15(%arg0: i32, %arg1: i32) -> (i32, i32, i32) {
    %c0_i32 = arith.constant 0 : i32
    %c0_i32_0 = arith.constant 0 : i32
    %c0_i32_1 = arith.constant 0 : i32
    return %arg0, %c0_i32, %c0_i32_0 : i32, i32, i32
  }
}

</mosaic_0001>

<llo_original>
// kernel: tpu_custom_call.1
$region0: #{tpu_custom_call.1}
  #allocation0 [shape = 'u32[]', space=smem, size = 0x4, offset = 0x4, fixed_abs, tag = 'smem constant byte address 0x4 - core index']
  #allocation1 [shape = 'u32[72,128]{1,0:T(1,128)}', space=vmem, size = 0x9000, scoped, tag = 'internal scratch']
  #allocation2 [shape = 'f32[1,8,32]{2,1,0:T(8,128)}', space=vmem, size = 0x1000, scoped, tag = 'scratch operand']
  %s0 = inlined_call_operand.hbm [shape: f32[2,8,32], index: 0, kind: input, shape index: {}]
  %s1 = inlined_call_operand.vmem [shape: bf16[2,32,96], index: 1, kind: input, shape index: {}]
  %s2 = inlined_call_operand.hbm [shape: f32[2,1,96], index: 2, kind: input, shape index: {}]
  %s3 = inlined_call_operand.vmem [shape: bf16[2,32,32], index: 3, kind: input, shape index: {}]
  %s4 = inlined_call_operand.vmem [shape: f32[2,1,32], index: 4, kind: input, shape index: {}]
  %s5 = inlined_call_operand.hbm [shape: f32[2,1,32], index: 5, kind: input, shape index: {}]
  %s6 = inlined_call_operand.vmem [shape: f32[2,1,32], index: 6, kind: input, shape index: {}]
  %s7 = inlined_call_operand.vmem [shape: bf16[2,32,64], index: 7, kind: input, shape index: {}]
  %s8 = inlined_call_operand.vmem [shape: f32[2,1,64], index: 8, kind: input, shape index: {}]
  %s9 = inlined_call_operand.vmem [shape: bf16[2,64,32], index: 9, kind: input, shape index: {}]
  %s10 = inlined_call_operand.vmem [shape: f32[2,1,32], index: 10, kind: input, shape index: {}]
  %s11 = inlined_call_operand.hbm [shape: f32[2,1,32], index: 11, kind: input, shape index: {}]
  %s12 = inlined_call_operand.vmem [shape: f32[2,1,32], index: 12, kind: input, shape index: {}]
  %s13 = inlined_call_operand.vmem [shape: f32[1,32], index: 13, kind: input, shape index: {}]
  %s14 = inlined_call_operand.vmem [shape: f32[1,32], index: 14, kind: input, shape index: {}]
  %s15 = inlined_call_operand.hbm [shape: f32[2,8,32], index: 15, kind: output, shape index: {}]
  %s16 = sld [smem:[#allocation0]]
  $region117: #{tpu_custom_call.1} parent=0
    _
  %s18 = ssub.s32 1, %s16
  %s19 = scalar_select 0, %s18, %s16
  $region1: #{tpu_custom_call.1} parent=0
    #allocation3 [shape = 'u8[8192]{0}', space=vmem, size = 0x2000, scoped, tag = 'input window, operand 0']
    #allocation4 [shape = 's32[2]{0}', space=sflag, size = 0x8, scoped, tag = 'scoped memory for tpu_custom_call.1']
    #allocation5 [shape = 's32[2]{0}', space=sflag, size = 0x8, scoped, tag = 'scoped memory for tpu_custom_call.1']
    #allocation6 [shape = 'u8[1024]{0}', space=vmem, size = 0x400, scoped, tag = 'input window, operand 2, single buffered']
    #allocation7 [shape = 's32[1]{0}', space=sflag, size = 0x4, scoped, tag = 'scoped memory for tpu_custom_call.1']
    #allocation8 [shape = 'u8[1024]{0}', space=vmem, size = 0x400, scoped, tag = 'input window, operand 5, single buffered']
    #allocation9 [shape = 'u8[1024]{0}', space=vmem, size = 0x400, scoped, tag = 'input window, operand 11, single buffered']
    #allocation10 [shape = 's32[1]{0}', space=sflag, size = 0x4, scoped, tag = 'scoped memory for tpu_custom_call.1']
    #allocation11 [shape = 'u8[8192]{0}', space=vmem, size = 0x2000, scoped, tag = 'output window, operand 0']
    %20 = vsyncpa [#allocation4], 0
    %s21 = scalar_lea.sflag [#allocation4], 1
    %22 = vsyncpa %s21, 0
    %23 = vsyncpa [#allocation7], 0
    %24 = vsyncpa [#allocation10], 0
    %25 = vsyncpa [#allocation5], 0
    %s26 = scalar_lea.sflag [#allocation5], 1
    %27 = vsyncpa %s26, 0
    loop: start=0, step=1, limit=6
    $region2: #{tpu_custom_call.1} parent=1 // loop_pre_header
      _
    $region3: #{tpu_custom_call.1} parent=1 // loop_header
      %s29 = sphi 0, %s33
      %p30 = scmp.ge.s32.totalorder %s29, 6
      %s36 = sphi 0, %s48
      %s37 = sphi 0, %s44
      %s38 = sphi 0, %s36
      %s39 = sphi 0, %s37
      %s40 = sphi 0, %s38
      %s41 = sphi 0, %s39
      %s51 = sphi 0, %s53
      %s54 = sphi 0, %s51
      %s55 = sphi 0, %s54
      %s71 = sphi 0, %s55
      %s75 = sphi 0, %s75
      %s77 = sphi 0, %s75
      %s78 = sphi 0, %s77
      %s92 = sphi 0, %s78
      %s96 = sphi 0, %s96
      %s98 = sphi 0, %s96
      %s99 = sphi 0, %s98
      %s113 = sphi 0, %s99
      %s117 = sphi 0, %s117
      %s119 = sphi 0, %s117
      %s120 = sphi 0, %s119
      %s134 = sphi 0, %s120
      %s138 = sphi 0, %s138
      %s140 = sphi 0, %s138
      %s141 = sphi 0, %s140
      %s155 = sphi 0, %s141
      %s159 = sphi 0, %s159
      %s161 = sphi 0, %s159
      %s162 = sphi 0, %s161
      %s176 = sphi 0, %s162
      %s180 = sphi 0, %s180
      %s182 = sphi 0, %s180
      %s183 = sphi 0, %s182
      %s197 = sphi 0, %s183
      %s201 = sphi 0, %s201
      %s203 = sphi 0, %s201
      %s204 = sphi 0, %s203
      %s218 = sphi 0, %s204
      %s222 = sphi 0, %s222
      %s224 = sphi 0, %s222
      %s225 = sphi 0, %s224
      %s239 = sphi 0, %s225
      %s243 = sphi 0, %s243
      %s245 = sphi 0, %s243
      %s246 = sphi 0, %s245
      %s260 = sphi 0, %s246
      %s264 = sphi 0, %s264
      %s266 = sphi 0, %s264
      %s267 = sphi 0, %s266
      %s281 = sphi 0, %s267
      %s285 = sphi 0, %s285
      %s287 = sphi 0, %s285
      %s288 = sphi 0, %s287
      %s302 = sphi 0, %s288
      %s306 = sphi 0, %s306
      %s308 = sphi 0, %s306
      %s309 = sphi 0, %s308
      %s323 = sphi 0, %s309
      %s327 = sphi 0, %s327
      %s329 = sphi 0, %s327
      %s330 = sphi 0, %s329
      %s344 = sphi 0, %s330
      %s348 = sphi 0, %s348
      %s350 = sphi 0, %s348
      %s351 = sphi 0, %s350
      %s365 = sphi 0, %s351
      %s371 = sphi 0, %s373
      %s374 = sphi 0, %s371
      %s375 = sphi 0, %s374
      %s391 = sphi 0, %s375
    $region4: #{tpu_custom_call.1} parent=1 // loop_header_branch
      %32 = sbr.rel (%p30) target = $region8
    $region5: #{tpu_custom_call.1} parent=1 // loop_body
      %s34 = ssub.s32 %s29, 1
      %s35 = ssub.s32 %s29, 2
      %s42 = sadd.s32 1, %s37
      %p43 = scmp.ge.s32.totalorder %s42, 2
      %s44 = scalar_select %p43, 0, %s42
      %s45 = sadd.s32 1, %s36
      %s46 = scalar_select %p43, %s45, %s36
      %p47 = scmp.ge.s32.totalorder %s46, 2
      %s48 = scalar_select %p47, 0, %s46
      %s49 = ssub.s32 %s36, %s48
      %p50 = scmp.eq.s32.totalorder %s49, 0
      %s52 = sadd.s32 %s51, 1
      %s53 = scalar_select %p50, %s51, %s52
      %p56 = pneg %p50
      %p57 = scmp.eq.s32.totalorder %s29, 3
      %p58 = por %p56, %p57
      %p59 = scmp.ne.s32.totalorder %s51, %s54
      %p60 = scmp.eq.s32.totalorder %s29, 0
      %p61 = por %p59, %p60
      %p62 = scmp.ne.s32.totalorder %s51, %s54
      %p63 = scmp.eq.s32.totalorder %s34, 3
      %p64 = por %p62, %p63
      %p65 = scmp.ne.s32.totalorder %s54, %s55
      %p66 = scmp.eq.s32.totalorder %s34, 0
      %p67 = por %p65, %p66
      %p68 = scmp.ne.s32.totalorder %s54, %s55
      %p69 = scmp.eq.s32.totalorder %s35, 3
      %p70 = por %p68, %p69
      %p72 = scmp.ne.s32.totalorder %s55, %s71
      %p73 = scmp.eq.s32.totalorder %s35, 0
      %p74 = por %p72, %p73
      %s76 = sadd.s32 %s75, 1
      %p79 = scmp.eq.s32.totalorder %s29, 3
      %p80 = scmp.ne.s32.totalorder %s75, %s77
      %p81 = scmp.eq.s32.totalorder %s29, 0
      %p82 = por %p80, %p81
      %p83 = scmp.ne.s32.totalorder %s75, %s77
      %p84 = scmp.eq.s32.totalorder %s34, 3
      %p85 = por %p83, %p84
      %p86 = scmp.ne.s32.totalorder %s77, %s78
      %p87 = scmp.eq.s32.totalorder %s34, 0
      %p88 = por %p86, %p87
      %p89 = scmp.ne.s32.totalorder %s77, %s78
      %p90 = scmp.eq.s32.totalorder %s35, 3
      %p91 = por %p89, %p90
      %p93 = scmp.ne.s32.totalorder %s78, %s92
      %p94 = scmp.eq.s32.totalorder %s35, 0
      %p95 = por %p93, %p94
      %s97 = sadd.s32 %s96, 1
      %p100 = scmp.eq.s32.totalorder %s29, 3
      %p101 = scmp.ne.s32.totalorder %s96, %s98
      %p102 = scmp.eq.s32.totalorder %s29, 0
      %p103 = por %p101, %p102
      %p104 = scmp.ne.s32.totalorder %s96, %s98
      %p105 = scmp.eq.s32.totalorder %s34, 3
      %p106 = por %p104, %p105
      %p107 = scmp.ne.s32.totalorder %s98, %s99
      %p108 = scmp.eq.s32.totalorder %s34, 0
      %p109 = por %p107, %p108
      %p110 = scmp.ne.s32.totalorder %s98, %s99
      %p111 = scmp.eq.s32.totalorder %s35, 3
      %p112 = por %p110, %p111
      %p114 = scmp.ne.s32.totalorder %s99, %s113
      %p115 = scmp.eq.s32.totalorder %s35, 0
      %p116 = por %p114, %p115
      %s118 = sadd.s32 %s117, 1
      %p121 = scmp.eq.s32.totalorder %s29, 3
      %p122 = scmp.ne.s32.totalorder %s117, %s119
      %p123 = scmp.eq.s32.totalorder %s29, 0
      %p124 = por %p122, %p123
      %p125 = scmp.ne.s32.totalorder %s117, %s119
      %p126 = scmp.eq.s32.totalorder %s34, 3
      %p127 = por %p125, %p126
      %p128 = scmp.ne.s32.totalorder %s119, %s120
      %p129 = scmp.eq.s32.totalorder %s34, 0
      %p130 = por %p128, %p129
      %p131 = scmp.ne.s32.totalorder %s119, %s120
      %p132 = scmp.eq.s32.totalorder %s35, 3
      %p133 = por %p131, %p132
      %p135 = scmp.ne.s32.totalorder %s120, %s134
      %p136 = scmp.eq.s32.totalorder %s35, 0
      %p137 = por %p135, %p136
      %s139 = sadd.s32 %s138, 1
      %p142 = scmp.eq.s32.totalorder %s29, 3
      %p143 = scmp.ne.s32.totalorder %s138, %s140
      %p144 = scmp.eq.s32.totalorder %s29, 0
      %p145 = por %p143, %p144
      %p146 = scmp.ne.s32.totalorder %s138, %s140
      %p147 = scmp.eq.s32.totalorder %s34, 3
      %p148 = por %p146, %p147
      %p149 = scmp.ne.s32.totalorder %s140, %s141
      %p150 = scmp.eq.s32.totalorder %s34, 0
      %p151 = por %p149, %p150
      %p152 = scmp.ne.s32.totalorder %s140, %s141
      %p153 = scmp.eq.s32.totalorder %s35, 3
      %p154 = por %p152, %p153
      %p156 = scmp.ne.s32.totalorder %s141, %s155
      %p157 = scmp.eq.s32.totalorder %s35, 0
      %p158 = por %p156, %p157
      %s160 = sadd.s32 %s159, 1
      %p163 = scmp.eq.s32.totalorder %s29, 3
      %p164 = scmp.ne.s32.totalorder %s159, %s161
      %p165 = scmp.eq.s32.totalorder %s29, 0
      %p166 = por %p164, %p165
      %p167 = scmp.ne.s32.totalorder %s159, %s161
      %p168 = scmp.eq.s32.totalorder %s34, 3
      %p169 = por %p167, %p168
      %p170 = scmp.ne.s32.totalorder %s161, %s162
      %p171 = scmp.eq.s32.totalorder %s34, 0
      %p172 = por %p170, %p171
      %p173 = scmp.ne.s32.totalorder %s161, %s162
      %p174 = scmp.eq.s32.totalorder %s35, 3
      %p175 = por %p173, %p174
      %p177 = scmp.ne.s32.totalorder %s162, %s176
      %p178 = scmp.eq.s32.totalorder %s35, 0
      %p179 = por %p177, %p178
      %s181 = sadd.s32 %s180, 1
      %p184 = scmp.eq.s32.totalorder %s29, 3
      %p185 = scmp.ne.s32.totalorder %s180, %s182
      %p186 = scmp.eq.s32.totalorder %s29, 0
      %p187 = por %p185, %p186
      %p188 = scmp.ne.s32.totalorder %s180, %s182
      %p189 = scmp.eq.s32.totalorder %s34, 3
      %p190 = por %p188, %p189
      %p191 = scmp.ne.s32.totalorder %s182, %s183
      %p192 = scmp.eq.s32.totalorder %s34, 0
      %p193 = por %p191, %p192
      %p194 = scmp.ne.s32.totalorder %s182, %s183
      %p195 = scmp.eq.s32.totalorder %s35, 3
      %p196 = por %p194, %p195
      %p198 = scmp.ne.s32.totalorder %s183, %s197
      %p199 = scmp.eq.s32.totalorder %s35, 0
      %p200 = por %p198, %p199
      %s202 = sadd.s32 %s201, 1
      %p205 = scmp.eq.s32.totalorder %s29, 3
      %p206 = scmp.ne.s32.totalorder %s201, %s203
      %p207 = scmp.eq.s32.totalorder %s29, 0
      %p208 = por %p206, %p207
      %p209 = scmp.ne.s32.totalorder %s201, %s203
      %p210 = scmp.eq.s32.totalorder %s34, 3
      %p211 = por %p209, %p210
      %p212 = scmp.ne.s32.totalorder %s203, %s204
      %p213 = scmp.eq.s32.totalorder %s34, 0
      %p214 = por %p212, %p213
      %p215 = scmp.ne.s32.totalorder %s203, %s204
      %p216 = scmp.eq.s32.totalorder %s35, 3
      %p217 = por %p215, %p216
      %p219 = scmp.ne.s32.totalorder %s204, %s218
      %p220 = scmp.eq.s32.totalorder %s35, 0
      %p221 = por %p219, %p220
      %s223 = sadd.s32 %s222, 1
      %p226 = scmp.eq.s32.totalorder %s29, 3
      %p227 = scmp.ne.s32.totalorder %s222, %s224
      %p228 = scmp.eq.s32.totalorder %s29, 0
      %p229 = por %p227, %p228
      %p230 = scmp.ne.s32.totalorder %s222, %s224
      %p231 = scmp.eq.s32.totalorder %s34, 3
      %p232 = por %p230, %p231
      %p233 = scmp.ne.s32.totalorder %s224, %s225
      %p234 = scmp.eq.s32.totalorder %s34, 0
      %p235 = por %p233, %p234
      %p236 = scmp.ne.s32.totalorder %s224, %s225
      %p237 = scmp.eq.s32.totalorder %s35, 3
      %p238 = por %p236, %p237
      %p240 = scmp.ne.s32.totalorder %s225, %s239
      %p241 = scmp.eq.s32.totalorder %s35, 0
      %p242 = por %p240, %p241
      %s244 = sadd.s32 %s243, 1
      %p247 = scmp.eq.s32.totalorder %s29, 3
      %p248 = scmp.ne.s32.totalorder %s243, %s245
      %p249 = scmp.eq.s32.totalorder %s29, 0
      %p250 = por %p248, %p249
      %p251 = scmp.ne.s32.totalorder %s243, %s245
      %p252 = scmp.eq.s32.totalorder %s34, 3
      %p253 = por %p251, %p252
      %p254 = scmp.ne.s32.totalorder %s245, %s246
      %p255 = scmp.eq.s32.totalorder %s34, 0
      %p256 = por %p254, %p255
      %p257 = scmp.ne.s32.totalorder %s245, %s246
      %p258 = scmp.eq.s32.totalorder %s35, 3
      %p259 = por %p257, %p258
      %p261 = scmp.ne.s32.totalorder %s246, %s260
      %p262 = scmp.eq.s32.totalorder %s35, 0
      %p263 = por %p261, %p262
      %s265 = sadd.s32 %s264, 1
      %p268 = scmp.eq.s32.totalorder %s29, 3
      %p269 = scmp.ne.s32.totalorder %s264, %s266
      %p270 = scmp.eq.s32.totalorder %s29, 0
      %p271 = por %p269, %p270
      %p272 = scmp.ne.s32.totalorder %s264, %s266
      %p273 = scmp.eq.s32.totalorder %s34, 3
      %p274 = por %p272, %p273
      %p275 = scmp.ne.s32.totalorder %s266, %s267
      %p276 = scmp.eq.s32.totalorder %s34, 0
      %p277 = por %p275, %p276
      %p278 = scmp.ne.s32.totalorder %s266, %s267
      %p279 = scmp.eq.s32.totalorder %s35, 3
      %p280 = por %p278, %p279
      %p282 = scmp.ne.s32.totalorder %s267, %s281
      %p283 = scmp.eq.s32.totalorder %s35, 0
      %p284 = por %p282, %p283
      %s286 = sadd.s32 %s285, 1
      %p289 = scmp.eq.s32.totalorder %s29, 3
      %p290 = scmp.ne.s32.totalorder %s285, %s287
      %p291 = scmp.eq.s32.totalorder %s29, 0
      %p292 = por %p290, %p291
      %p293 = scmp.ne.s32.totalorder %s285, %s287
      %p294 = scmp.eq.s32.totalorder %s34, 3
      %p295 = por %p293, %p294
      %p296 = scmp.ne.s32.totalorder %s287, %s288
      %p297 = scmp.eq.s32.totalorder %s34, 0
      %p298 = por %p296, %p297
      %p299 = scmp.ne.s32.totalorder %s287, %s288
      %p300 = scmp.eq.s32.totalorder %s35, 3
      %p301 = por %p299, %p300
      %p303 = scmp.ne.s32.totalorder %s288, %s302
      %p304 = scmp.eq.s32.totalorder %s35, 0
      %p305 = por %p303, %p304
      %s307 = sadd.s32 %s306, 1
      %p310 = scmp.eq.s32.totalorder %s29, 3
      %p311 = scmp.ne.s32.totalorder %s306, %s308
      %p312 = scmp.eq.s32.totalorder %s29, 0
      %p313 = por %p311, %p312
      %p314 = scmp.ne.s32.totalorder %s306, %s308
      %p315 = scmp.eq.s32.totalorder %s34, 3
      %p316 = por %p314, %p315
      %p317 = scmp.ne.s32.totalorder %s308, %s309
      %p318 = scmp.eq.s32.totalorder %s34, 0
      %p319 = por %p317, %p318
      %p320 = scmp.ne.s32.totalorder %s308, %s309
      %p321 = scmp.eq.s32.totalorder %s35, 3
      %p322 = por %p320, %p321
      %p324 = scmp.ne.s32.totalorder %s309, %s323
      %p325 = scmp.eq.s32.totalorder %s35, 0
      %p326 = por %p324, %p325
      %s328 = sadd.s32 %s327, 1
      %p331 = scmp.eq.s32.totalorder %s29, 3
      %p332 = scmp.ne.s32.totalorder %s327, %s329
      %p333 = scmp.eq.s32.totalorder %s29, 0
      %p334 = por %p332, %p333
      %p335 = scmp.ne.s32.totalorder %s327, %s329
      %p336 = scmp.eq.s32.totalorder %s34, 3
      %p337 = por %p335, %p336
      %p338 = scmp.ne.s32.totalorder %s329, %s330
      %p339 = scmp.eq.s32.totalorder %s34, 0
      %p340 = por %p338, %p339
      %p341 = scmp.ne.s32.totalorder %s329, %s330
      %p342 = scmp.eq.s32.totalorder %s35, 3
      %p343 = por %p341, %p342
      %p345 = scmp.ne.s32.totalorder %s330, %s344
      %p346 = scmp.eq.s32.totalorder %s35, 0
      %p347 = por %p345, %p346
      %s349 = sadd.s32 %s348, 1
      %p352 = scmp.eq.s32.totalorder %s29, 3
      %p353 = scmp.ne.s32.totalorder %s348, %s350
      %p354 = scmp.eq.s32.totalorder %s29, 0
      %p355 = por %p353, %p354
      %p356 = scmp.ne.s32.totalorder %s348, %s350
      %p357 = scmp.eq.s32.totalorder %s34, 3
      %p358 = por %p356, %p357
      %p359 = scmp.ne.s32.totalorder %s350, %s351
      %p360 = scmp.eq.s32.totalorder %s34, 0
      %p361 = por %p359, %p360
      %p362 = scmp.ne.s32.totalorder %s350, %s351
      %p363 = scmp.eq.s32.totalorder %s35, 3
      %p364 = por %p362, %p363
      %p366 = scmp.ne.s32.totalorder %s351, %s365
      %p367 = scmp.eq.s32.totalorder %s35, 0
      %p368 = por %p366, %p367
      %s369 = ssub.s32 %s36, %s48
      %p370 = scmp.eq.s32.totalorder %s369, 0
      %s372 = sadd.s32 %s371, 1
      %s373 = scalar_select %p370, %s371, %s372
      %p376 = pneg %p370
      %p377 = scmp.eq.s32.totalorder %s29, 3
      %p378 = por %p376, %p377
      %p379 = scmp.ne.s32.totalorder %s371, %s374
      %p380 = scmp.eq.s32.totalorder %s29, 0
      %p381 = por %p379, %p380
      %p382 = scmp.ne.s32.totalorder %s371, %s374
      %p383 = scmp.eq.s32.totalorder %s34, 3
      %p384 = por %p382, %p383
      %p385 = scmp.ne.s32.totalorder %s374, %s375
      %p386 = scmp.eq.s32.totalorder %s34, 0
      %p387 = por %p385, %p386
      %p388 = scmp.ne.s32.totalorder %s374, %s375
      %p389 = scmp.eq.s32.totalorder %s35, 3
      %p390 = por %p388, %p389
      %p392 = scmp.ne.s32.totalorder %s375, %s391
      %p393 = scmp.eq.s32.totalorder %s35, 0
      %p394 = por %p392, %p393
      %p395 = scmp.le.s32.totalorder 1, %s29
      %p396 = scmp.lt.s32.totalorder %s29, 5
      %p397 = pnand %p395, %p396
      %p398 = pneg %p397
      // Predicated region
      $region9: #{tpu_custom_call.1} parent=5 // pred_check
        _
      $region10: #{tpu_custom_call.1} parent=5 // pred_check_branch
        %400 = sbr.rel (%p397) target = $region12
      $region11: #{tpu_custom_call.1} parent=5 // pred_region
        %s401 = ssub.s32 %s29, 1
        // Predicated region
        $region13: #{tpu_custom_call.1} parent=11 // pred_check
          %p402 = pneg %p88
        $region14: #{tpu_custom_call.1} parent=11 // pred_check_branch
          %404 = sbr.rel (%p402) target = $region16
        $region15: #{tpu_custom_call.1} parent=11 // pred_region
          _
        $region16: #{tpu_custom_call.1} parent=11 // pred_fallthru
          _
        // Predicated region
        $region17: #{tpu_custom_call.1} parent=11 // pred_check
          %p405 = pneg %p109
        $region18: #{tpu_custom_call.1} parent=11 // pred_check_branch
          %407 = sbr.rel (%p405) target = $region20
        $region19: #{tpu_custom_call.1} parent=11 // pred_region
          %409 = vsyncadd [#allocation7], 0
          %s410 = sshll.u32 %s2, 4
          %s411 = int_to_ptr.hbm [resolvable:$true] %s410
          %s412 = sshll.u32 [#allocation6], 4
          %s413 = int_to_ptr.vmem [resolvable:$true] %s412
          %418 = dma.hbm_to_vmem [thread:$0]  %s411, 32, %s413, [#allocation7], 16, 16, 1
        $region20: #{tpu_custom_call.1} parent=11 // pred_fallthru
          _
        // Predicated region
        $region21: #{tpu_custom_call.1} parent=11 // pred_check
          %p419 = pneg %p130
        $region22: #{tpu_custom_call.1} parent=11 // pred_check_branch
          %421 = sbr.rel (%p419) target = $region24
        $region23: #{tpu_custom_call.1} parent=11 // pred_region
          _
        $region24: #{tpu_custom_call.1} parent=11 // pred_fallthru
          _
        // Predicated region
        $region25: #{tpu_custom_call.1} parent=11 // pred_check
          %p422 = pneg %p151
        $region26: #{tpu_custom_call.1} parent=11 // pred_check_branch
          %424 = sbr.rel (%p422) target = $region28
        $region27: #{tpu_custom_call.1} parent=11 // pred_region
          _
        $region28: #{tpu_custom_call.1} parent=11 // pred_fallthru
          _
        // Predicated region
        $region29: #{tpu_custom_call.1} parent=11 // pred_check
          %p425 = pneg %p172
        $region30: #{tpu_custom_call.1} parent=11 // pred_check_branch
          %427 = sbr.rel (%p425) target = $region32
        $region31: #{tpu_custom_call.1} parent=11 // pred_region
          %429 = vsyncadd [#allocation7], 0
          %s430 = sshll.u32 %s5, 4
          %s431 = int_to_ptr.hbm [resolvable:$true] %s430
          %s432 = sshll.u32 [#allocation8], 4
          %s433 = int_to_ptr.vmem [resolvable:$true] %s432
          %438 = dma.hbm_to_vmem [thread:$0]  %s431, 32, %s433, [#allocation7], 16, 16, 1
        $region32: #{tpu_custom_call.1} parent=11 // pred_fallthru
          _
        // Predicated region
        $region33: #{tpu_custom_call.1} parent=11 // pred_check
          %p439 = pneg %p193
        $region34: #{tpu_custom_call.1} parent=11 // pred_check_branch
          %441 = sbr.rel (%p439) target = $region36
        $region35: #{tpu_custom_call.1} parent=11 // pred_region
          _
        $region36: #{tpu_custom_call.1} parent=11 // pred_fallthru
          _
        // Predicated region
        $region37: #{tpu_custom_call.1} parent=11 // pred_check
          %p442 = pneg %p214
        $region38: #{tpu_custom_call.1} parent=11 // pred_check_branch
          %444 = sbr.rel (%p442) target = $region40
        $region39: #{tpu_custom_call.1} parent=11 // pred_region
          _
        $region40: #{tpu_custom_call.1} parent=11 // pred_fallthru
          _
        // Predicated region
        $region41: #{tpu_custom_call.1} parent=11 // pred_check
          %p445 = pneg %p235
        $region42: #{tpu_custom_call.1} parent=11 // pred_check_branch
          %447 = sbr.rel (%p445) target = $region44
        $region43: #{tpu_custom_call.1} parent=11 // pred_region
          _
        $region44: #{tpu_custom_call.1} parent=11 // pred_fallthru
          _
        // Predicated region
        $region45: #{tpu_custom_call.1} parent=11 // pred_check
          %p448 = pneg %p256
        $region46: #{tpu_custom_call.1} parent=11 // pred_check_branch
          %450 = sbr.rel (%p448) target = $region48
        $region47: #{tpu_custom_call.1} parent=11 // pred_region
          _
        $region48: #{tpu_custom_call.1} parent=11 // pred_fallthru
          _
        // Predicated region
        $region49: #{tpu_custom_call.1} parent=11 // pred_check
          %p451 = pneg %p277
        $region50: #{tpu_custom_call.1} parent=11 // pred_check_branch
          %453 = sbr.rel (%p451) target = $region52
        $region51: #{tpu_custom_call.1} parent=11 // pred_region
          _
        $region52: #{tpu_custom_call.1} parent=11 // pred_fallthru
          _
        // Predicated region
        $region53: #{tpu_custom_call.1} parent=11 // pred_check
          %p454 = pneg %p298
        $region54: #{tpu_custom_call.1} parent=11 // pred_check_branch
          %456 = sbr.rel (%p454) target = $region56
        $region55: #{tpu_custom_call.1} parent=11 // pred_region
          %458 = vsyncadd [#allocation10], 0
          %s459 = sshll.u32 %s11, 4
          %s460 = int_to_ptr.hbm [resolvable:$true] %s459
          %s461 = sshll.u32 [#allocation9], 4
          %s462 = int_to_ptr.vmem [resolvable:$true] %s461
          %467 = dma.hbm_to_vmem [thread:$0]  %s460, 32, %s462, [#allocation10], 16, 16, 1
        $region56: #{tpu_custom_call.1} parent=11 // pred_fallthru
          _
        // Predicated region
        $region57: #{tpu_custom_call.1} parent=11 // pred_check
          %p468 = pneg %p319
        $region58: #{tpu_custom_call.1} parent=11 // pred_check_branch
          %470 = sbr.rel (%p468) target = $region60
        $region59: #{tpu_custom_call.1} parent=11 // pred_region
          _
        $region60: #{tpu_custom_call.1} parent=11 // pred_fallthru
          _
        // Predicated region
        $region61: #{tpu_custom_call.1} parent=11 // pred_check
          %p471 = pneg %p340
        $region62: #{tpu_custom_call.1} parent=11 // pred_check_branch
          %473 = sbr.rel (%p471) target = $region64
        $region63: #{tpu_custom_call.1} parent=11 // pred_region
          _
        $region64: #{tpu_custom_call.1} parent=11 // pred_fallthru
          _
        // Predicated region
        $region65: #{tpu_custom_call.1} parent=11 // pred_check
          %p474 = pneg %p361
        $region66: #{tpu_custom_call.1} parent=11 // pred_check_branch
          %476 = sbr.rel (%p474) target = $region68
        $region67: #{tpu_custom_call.1} parent=11 // pred_region
          _
        $region68: #{tpu_custom_call.1} parent=11 // pred_fallthru
          _
      $region12: #{tpu_custom_call.1} parent=5 // pred_fallthru
        _
      %p477 = scmp.lt.s32.totalorder %s29, 4
      // Predicated region
      $region69: #{tpu_custom_call.1} parent=5 // pred_check
        %p478 = pneg %p477
      $region70: #{tpu_custom_call.1} parent=5 // pred_check_branch
        %480 = sbr.rel (%p478) target = $region72
      $region71: #{tpu_custom_call.1} parent=5 // pred_region
        // Predicated region
        $region73: #{tpu_custom_call.1} parent=71 // pred_check
          %p481 = pneg %p61
        $region74: #{tpu_custom_call.1} parent=71 // pred_check_branch
          %483 = sbr.rel (%p481) target = $region76
        $region75: #{tpu_custom_call.1} parent=71 // pred_region
          %s484 = sand.u32 %s51, 1
          %s485 = scalar_lea.sflag [#allocation4], %s484
          %s486 = sand.u32 %s51, 1
          %s487 = smul.addr %s486, 8
          %s488 = scalar_lea.vmem [#allocation3], %s487
          %490 = vsyncadd %s485, 0
          %s491 = smul.addr %s36, 8
          %s492 = scalar_lea.hbm %s0, %s491
          %s494 = sshll.u32 %s492, 4
          %s495 = int_to_ptr.hbm [resolvable:$true] %s494
          %s496 = sshll.u32 %s488, 4
          %s497 = int_to_ptr.vmem [resolvable:$true] %s496
          %499 = dma.hbm_to_vmem [thread:$0]  %s495, 128, %s497, %s485
        $region76: #{tpu_custom_call.1} parent=71 // pred_fallthru
          _
      $region72: #{tpu_custom_call.1} parent=5 // pred_fallthru
        _
      %p500 = scmp.le.s32.totalorder 1, %s29
      %p501 = scmp.lt.s32.totalorder %s29, 5
      %p502 = pnand %p500, %p501
      %p503 = pneg %p502
      // Predicated region
      $region77: #{tpu_custom_call.1} parent=5 // pred_check
        _
      $region78: #{tpu_custom_call.1} parent=5 // pred_check_branch
        %505 = sbr.rel (%p502) target = $region80
      $region79: #{tpu_custom_call.1} parent=5 // pred_region
        %s506 = ssub.s32 %s29, 1
        %s507 = sand.u32 %s54, 1
        %s508 = scalar_lea.sflag [#allocation4], %s507
        %s509 = sand.u32 %s54, 1
        %s510 = smul.addr %s509, 8
        %s511 = scalar_lea.vmem [#allocation3], %s510
        // Predicated region
        $region81: #{tpu_custom_call.1} parent=79 // pred_check
          %p512 = pneg %p67
        $region82: #{tpu_custom_call.1} parent=79 // pred_check_branch
          %514 = sbr.rel (%p512) target = $region84
        $region83: #{tpu_custom_call.1} parent=79 // pred_region
          %516 = dma.done %s508, 128
        $region84: #{tpu_custom_call.1} parent=79 // pred_fallthru
          _
        // Predicated region
        $region85: #{tpu_custom_call.1} parent=79 // pred_check
          %p517 = pneg %p109
        $region86: #{tpu_custom_call.1} parent=79 // pred_check_branch
          %519 = sbr.rel (%p517) target = $region88
        $region87: #{tpu_custom_call.1} parent=79 // pred_region
          %521 = dma.done [#allocation7], 32
        $region88: #{tpu_custom_call.1} parent=79 // pred_fallthru
          _
        // Predicated region
        $region89: #{tpu_custom_call.1} parent=79 // pred_check
          %p522 = pneg %p172
        $region90: #{tpu_custom_call.1} parent=79 // pred_check_branch
          %524 = sbr.rel (%p522) target = $region92
        $region91: #{tpu_custom_call.1} parent=79 // pred_region
          %526 = dma.done [#allocation7], 32
        $region92: #{tpu_custom_call.1} parent=79 // pred_fallthru
          _
        // Predicated region
        $region93: #{tpu_custom_call.1} parent=79 // pred_check
          %p527 = pneg %p298
        $region94: #{tpu_custom_call.1} parent=79 // pred_check_branch
          %529 = sbr.rel (%p527) target = $region96
        $region95: #{tpu_custom_call.1} parent=79 // pred_region
          %531 = dma.done [#allocation10], 32
        $region96: #{tpu_custom_call.1} parent=79 // pred_fallthru
          _
        %s532 = sand.u32 %s54, 1
        %s533 = scalar_lea.sflag [#allocation4], %s532
        %s534 = sand.u32 %s54, 1
        %s535 = smul.addr %s534, 8
        %s536 = scalar_lea.vmem [#allocation3], %s535
        %p537 = pneg %p67
        %p538 = pneg %p64
        %p539 = pneg %p88
        %p540 = pneg %p85
        %p541 = pneg %p109
        %p542 = pneg %p106
        %p543 = pneg %p130
        %p544 = pneg %p127
        %p545 = pneg %p151
        %p546 = pneg %p148
        %p547 = pneg %p172
        %p548 = pneg %p169
        %p549 = pneg %p193
        %p550 = pneg %p190
        %p551 = pneg %p214
        %p552 = pneg %p211
        %p553 = pneg %p235
        %p554 = pneg %p232
        %p555 = pneg %p256
        %p556 = pneg %p253
        %p557 = pneg %p277
        %p558 = pneg %p274
        %p559 = pneg %p298
        %p560 = pneg %p295
        %p561 = pneg %p319
        %p562 = pneg %p316
        %p563 = pneg %p340
        %p564 = pneg %p337
        %p565 = pneg %p361
        %p566 = pneg %p358
        %p567 = pneg %p387
        %p568 = pneg %p384
        %s569 = sand.u32 %s374, 1
        %s570 = scalar_lea.sflag [#allocation5], %s569
        %s571 = sand.u32 %s374, 1
        %s572 = smul.addr %s571, 8
        %s573 = scalar_lea.vmem [#allocation11], %s572
        %p575 = scmp.eq.s32.totalorder %s39, 0
        // Predicated region
        $region97: #{tpu_custom_call.1} parent=79 // pred_check
          %p576 = pneg %p575
        $region98: #{tpu_custom_call.1} parent=79 // pred_check_branch
          %578 = sbr.rel (%p576) target = $region100
        $region99: #{tpu_custom_call.1} parent=79 // pred_region
          %v579 = vld [vmem:[%s511] sm:$0xff]
          %vm580 = vcmask 261120
          %581 = vst.msk [vmem:[#allocation2] sm:$0xff] %vm580, %v579
        $region100: #{tpu_custom_call.1} parent=79 // pred_fallthru
          _
        %v582 = vld [vmem:[#allocation2] sm:$0xff]
        %v583 = vpack.c.bf16 %v582, %v582
        %s584 = smul.u32 %s39, 4
        %s585 = smul.addr %s584, 4
        %s586 = scalar_lea.vmem %s1, %s585
        %v587 = vld [vmem:[%s586] sm:$0xf]
        %v588 = vld [vmem:[%s586 + $0x4] sm:$0xf]
        %v589 = vld [vmem:[%s586 + $0x8] sm:$0xf]
        %v590 = vld [vmem:[%s586 + $0xc] sm:$0xf]
        %s591 = scalar_lea.vmem [#allocation6], %s39
        %v592 = vld [vmem:[%s591] sm:$0x1]
        %v594 = vperm.slane %v592, 0
        %v600 = vunpack.c.l.b16 %v587
        %v601 = vunpack.c.l.b16 %v588
        %v602 = vunpack.c.l.b16 %v589
        %v603 = vunpack.c.l.b16 %v590
        %v604 = vpack.c.b16 %v601, %v600
        %v605 = vpack.c.b16 %v603, %v602
        %vm608 = vcmask 261120
        %v610 = vsel %vm608, %v583, 0
        %612 = vmatpush.bf16.msra.mxu0 0
        %613 = vmatpush.bf16.msra.mxu0 0
        %614 = vmatpush.bf16.msra.mxu0 0
        %615 = vmatpush.bf16.msra.mxu0 0
        %616 = vmatpush.bf16.msra.mxu0 0
        %617 = vmatpush.bf16.msra.mxu0 0
        %618 = vmatpush.bf16.msra.mxu0 %v605
        %619 = vmatpush.bf16.msra.mxu0 %v604
        %620 = vmatmul.bf16.gmra.mxu0 %v610
        %v621 = vpop.f32.mrf.mxu0
        %v622 = vadd.f32 %v594, %v621
        %v623 = vpop.f32.mrf.mxu0
        %624 = vdwg.mxu0
        %v625 = vmul.f32 %v622, 0.35355338
        %v626 = vpack.c.bf16 %v625, %v625
        %v627 = vpack.c.bf16 %v622, %v622
        %629 = vrot.lane.b32.xlu0 %v626, 120
        %v630 = vpop.permute.xlu0 %629
        %631 = vrot.lane.b32.xlu0 %v626, 112
        %v632 = vpop.permute.xlu0 %631
        %633 = vrot.lane.b32.xlu0 %v626, 104
        %v634 = vpop.permute.xlu0 %633
        %636 = vrot.lane.b32.xlu0 %v627, 120
        %v637 = vpop.permute.xlu0 %636
        %638 = vrot.lane.b32.xlu0 %v627, 112
        %v639 = vpop.permute.xlu0 %638
        %640 = vrot.lane.b32.xlu0 %v627, 104
        %v641 = vpop.permute.xlu0 %640
        %v642 = vunpack.c.l.b16 %v627
        %v643 = vpack.c.b16 %v642, %v642
        %644 = vrot.lane.b32.xlu0 %v643, 96
        %v645 = vpop.permute.xlu0 %644
        %vm646 = vcmask 64512
        %v648 = vsel %vm646, %v626, 0
        %v651 = vsel %vm646, %v645, 0
        %653 = vmatpush.bf16.xpose.msra.mxu0 0
        %654 = vmatpush.bf16.xpose.msra.mxu0 0
        %655 = vmatpush.bf16.xpose.msra.mxu0 0
        %656 = vmatpush.bf16.xpose.msra.mxu0 0
        %657 = vmatpush.bf16.xpose.msra.mxu0 0
        %658 = vmatpush.bf16.xpose.msra.mxu0 0
        %659 = vmatpush.bf16.xpose.msra.mxu0 0
        %660 = vmatpush.bf16.xpose.msra.mxu0 %v651
        %661 = vmatmul.bf16.gmra.mxu0 %v648
        %v662 = vpop.f32.mrf.mxu0
        %v663 = vadd.f32 0.0, %v662
        %v664 = vpop.f32.mrf.mxu0
        %665 = vdwg.mxu0
        %v666 = vunpack.c.l.b16 %v637
        %v667 = vpack.c.b16 %v666, %v666
        %668 = vrot.lane.b32.xlu0 %v667, 96
        %v669 = vpop.permute.xlu0 %668
        %v671 = vsel %vm646, %v630, 0
        %v674 = vsel %vm646, %v669, 0
        %676 = vmatpush.bf16.xpose.msra.mxu0 0
        %677 = vmatpush.bf16.xpose.msra.mxu0 0
        %678 = vmatpush.bf16.xpose.msra.mxu0 0
        %679 = vmatpush.bf16.xpose.msra.mxu0 0
        %680 = vmatpush.bf16.xpose.msra.mxu0 0
        %681 = vmatpush.bf16.xpose.msra.mxu0 0
        %682 = vmatpush.bf16.xpose.msra.mxu0 0
        %683 = vmatpush.bf16.xpose.msra.mxu0 %v674
        %684 = vmatmul.bf16.gmra.mxu0 %v671
        %v685 = vpop.f32.mrf.mxu0
        %v686 = vadd.f32 0.0, %v685
        %v687 = vpop.f32.mrf.mxu0
        %688 = vdwg.mxu0
        %v689 = vunpack.c.l.b16 %v639
        %v690 = vpack.c.b16 %v689, %v689
        %691 = vrot.lane.b32.xlu0 %v690, 96
        %v692 = vpop.permute.xlu0 %691
        %v694 = vsel %vm646, %v632, 0
        %v697 = vsel %vm646, %v692, 0
        %699 = vmatpush.bf16.xpose.msra.mxu0 0
        %700 = vmatpush.bf16.xpose.msra.mxu0 0
        %701 = vmatpush.bf16.xpose.msra.mxu0 0
        %702 = vmatpush.bf16.xpose.msra.mxu0 0
        %703 = vmatpush.bf16.xpose.msra.mxu0 0
        %704 = vmatpush.bf16.xpose.msra.mxu0 0
        %705 = vmatpush.bf16.xpose.msra.mxu0 0
        %706 = vmatpush.bf16.xpose.msra.mxu0 %v697
        %707 = vmatmul.bf16.gmra.mxu0 %v694
        %v708 = vpop.f32.mrf.mxu0
        %v709 = vadd.f32 0.0, %v708
        %v710 = vpop.f32.mrf.mxu0
        %711 = vdwg.mxu0
        %v712 = vunpack.c.l.b16 %v641
        %v713 = vpack.c.b16 %v712, %v712
        %714 = vrot.lane.b32.xlu0 %v713, 96
        %v715 = vpop.permute.xlu0 %714
        %v717 = vsel %vm646, %v634, 0
        %v720 = vsel %vm646, %v715, 0
        %722 = vmatpush.bf16.xpose.msra.mxu0 0
        %723 = vmatpush.bf16.xpose.msra.mxu0 0
        %724 = vmatpush.bf16.xpose.msra.mxu0 0
        %725 = vmatpush.bf16.xpose.msra.mxu0 0
        %726 = vmatpush.bf16.xpose.msra.mxu0 0
        %727 = vmatpush.bf16.xpose.msra.mxu0 0
        %728 = vmatpush.bf16.xpose.msra.mxu0 0
        %729 = vmatpush.bf16.xpose.msra.mxu0 %v720
        %730 = vmatmul.bf16.gmra.mxu0 %v717
        %v731 = vpop.f32.mrf.mxu0
        %v732 = vadd.f32 0.0, %v731
        %v733 = vpop.f32.mrf.mxu0
        %734 = vdwg.mxu0
        %v735 = vsel %vm646, %v663, -inf
        %736 = vmax.xlane.f32.xlu0 %v735
        %v737 = vpop.xlane.xlu0 %736
        %v738 = vsel %vm646, %v686, -inf
        %739 = vmax.xlane.f32.xlu0 %v738
        %v740 = vpop.xlane.xlu0 %739
        %v741 = vsel %vm646, %v709, -inf
        %742 = vmax.xlane.f32.xlu0 %v741
        %v743 = vpop.xlane.xlu0 %742
        %v744 = vsel %vm646, %v732, -inf
        %745 = vmax.xlane.f32.xlu0 %v744
        %v746 = vpop.xlane.xlu0 %745
        %v747 = vsub.f32 %v663, %v737
        %v748 = vsub.f32 %v686, %v740
        %v749 = vsub.f32 %v709, %v743
        %v750 = vsub.f32 %v732, %v746
        %v751 = vmul.f32 %v747, 1.442695
        %v752 = vpow.pop %v751
        %v753 = vmul.f32 %v748, 1.442695
        %v754 = vpow.pop %v753
        %v755 = vmul.f32 %v749, 1.442695
        %v756 = vpow.pop %v755
        %v757 = vmul.f32 %v750, 1.442695
        %v758 = vpow.pop %v757
        %v759 = vsel %vm646, %v752, 0.0
        %760 = vadd.xlane.f32.xlu0 %v759
        %v761 = vpop.xlane.xlu0 %760
        %v762 = vsel %vm646, %v754, 0.0
        %763 = vadd.xlane.f32.xlu0 %v762
        %v764 = vpop.xlane.xlu0 %763
        %v765 = vsel %vm646, %v756, 0.0
        %766 = vadd.xlane.f32.xlu0 %v765
        %v767 = vpop.xlane.xlu0 %766
        %v768 = vsel %vm646, %v758, 0.0
        %769 = vadd.xlane.f32.xlu0 %v768
        %v770 = vpop.xlane.xlu0 %769
        %v771 = vrcp.pop %v761
        %v772 = vrcp.pop %v764
        %v773 = vrcp.pop %v767
        %v774 = vrcp.pop %v770
        %v775 = vmul.f32 %v752, %v771
        %v776 = vmul.f32 %v754, %v772
        %v777 = vmul.f32 %v756, %v773
        %v778 = vmul.f32 %v758, %v774
        %v779 = vpack.c.bf16 %v775, %v775
        %v780 = vpack.c.bf16 %v776, %v776
        %v781 = vpack.c.bf16 %v777, %v777
        %v782 = vpack.c.bf16 %v778, %v778
        %783 = vrot.lane.b32.xlu0 %v643, 64
        %v784 = vpop.permute.xlu0 %783
        %v786 = vsel %vm646, %v779, 0
        %vm788 = vcmask 1043456
        %v790 = vsel %vm788, %v784, 0
        %792 = vmatpush.bf16.msra.mxu0 0
        %793 = vmatpush.bf16.msra.mxu0 0
        %794 = vmatpush.bf16.msra.mxu0 0
        %795 = vmatpush.bf16.msra.mxu0 0
        %796 = vmatpush.bf16.msra.mxu0 0
        %797 = vmatpush.bf16.msra.mxu0 0
        %798 = vmatpush.bf16.msra.mxu0 0
        %799 = vmatpush.bf16.msra.mxu0 %v790
        %800 = vmatmul.bf16.gmra.mxu0 %v786
        %v801 = vpop.f32.mrf.mxu0
        %v802 = vadd.f32 0.0, %v801
        %v803 = vpop.f32.mrf.mxu0
        %804 = vdwg.mxu0
        %805 = vrot.lane.b32.xlu0 %v667, 64
        %v806 = vpop.permute.xlu0 %805
        %v808 = vsel %vm646, %v780, 0
        %v811 = vsel %vm788, %v806, 0
        %813 = vmatpush.bf16.msra.mxu0 0
        %814 = vmatpush.bf16.msra.mxu0 0
        %815 = vmatpush.bf16.msra.mxu0 0
        %816 = vmatpush.bf16.msra.mxu0 0
        %817 = vmatpush.bf16.msra.mxu0 0
        %818 = vmatpush.bf16.msra.mxu0 0
        %819 = vmatpush.bf16.msra.mxu0 0
        %820 = vmatpush.bf16.msra.mxu0 %v811
        %821 = vmatmul.bf16.gmra.mxu0 %v808
        %v822 = vpop.f32.mrf.mxu0
        %v823 = vadd.f32 0.0, %v822
        %v824 = vpop.f32.mrf.mxu0
        %825 = vdwg.mxu0
        %826 = vrot.lane.b32.xlu0 %v690, 64
        %v827 = vpop.permute.xlu0 %826
        %v829 = vsel %vm646, %v781, 0
        %v832 = vsel %vm788, %v827, 0
        %834 = vmatpush.bf16.msra.mxu0 0
        %835 = vmatpush.bf16.msra.mxu0 0
        %836 = vmatpush.bf16.msra.mxu0 0
        %837 = vmatpush.bf16.msra.mxu0 0
        %838 = vmatpush.bf16.msra.mxu0 0
        %839 = vmatpush.bf16.msra.mxu0 0
        %840 = vmatpush.bf16.msra.mxu0 0
        %841 = vmatpush.bf16.msra.mxu0 %v832
        %842 = vmatmul.bf16.gmra.mxu0 %v829
        %v843 = vpop.f32.mrf.mxu0
        %v844 = vadd.f32 0.0, %v843
        %v845 = vpop.f32.mrf.mxu0
        %846 = vdwg.mxu0
        %847 = vrot.lane.b32.xlu0 %v713, 64
        %v848 = vpop.permute.xlu0 %847
        %v850 = vsel %vm646, %v782, 0
        %v853 = vsel %vm788, %v848, 0
        %855 = vmatpush.bf16.msra.mxu0 0
        %856 = vmatpush.bf16.msra.mxu0 0
        %857 = vmatpush.bf16.msra.mxu0 0
        %858 = vmatpush.bf16.msra.mxu0 0
        %859 = vmatpush.bf16.msra.mxu0 0
        %860 = vmatpush.bf16.msra.mxu0 0
        %861 = vmatpush.bf16.msra.mxu0 0
        %862 = vmatpush.bf16.msra.mxu0 %v853
        %863 = vmatmul.bf16.gmra.mxu0 %v850
        %v864 = vpop.f32.mrf.mxu0
        %v865 = vadd.f32 0.0, %v864
        %v866 = vpop.f32.mrf.mxu0
        %867 = vdwg.mxu0
        %869 = vrot.lane.b32.xlu0 %v823, 8
        %v870 = vpop.permute.xlu0 %869
        %873 = vrot.lane.b32.xlu0 %v844, 16
        %v874 = vpop.permute.xlu0 %873
        %877 = vrot.lane.b32.xlu0 %v865, 24
        %v878 = vpop.permute.xlu0 %877
        %v880 = vsel %vm646, %v802, %v870
        %vm881 = vcmask 130048
        %v882 = vsel %vm881, %v880, %v874
        %vm883 = vcmask 195584
        %v884 = vsel %vm883, %v882, %v878
        %v885 = vpack.c.bf16 %v884, %v884
        %s886 = smul.addr %s584, 4
        %s887 = scalar_lea.vmem %s3, %s886
        %v888 = vld [vmem:[%s887] sm:$0xf]
        %v889 = vld [vmem:[%s887 + $0x4] sm:$0xf]
        %v890 = vld [vmem:[%s887 + $0x8] sm:$0xf]
        %v891 = vld [vmem:[%s887 + $0xc] sm:$0xf]
        %s892 = scalar_lea.vmem %s4, %s39
        %v893 = vld [vmem:[%s892] sm:$0x1]
        %v895 = vperm.slane %v893, 0
        %v901 = vunpack.c.l.b16 %v888
        %v902 = vunpack.c.l.b16 %v889
        %v903 = vunpack.c.l.b16 %v890
        %v904 = vunpack.c.l.b16 %v891
        %v905 = vpack.c.b16 %v902, %v901
        %v906 = vpack.c.b16 %v904, %v903
        %v910 = vsel %vm608, %v885, 0
        %912 = vmatpush.bf16.msra.mxu0 0
        %913 = vmatpush.bf16.msra.mxu0 0
        %914 = vmatpush.bf16.msra.mxu0 0
        %915 = vmatpush.bf16.msra.mxu0 0
        %916 = vmatpush.bf16.msra.mxu0 0
        %917 = vmatpush.bf16.msra.mxu0 0
        %918 = vmatpush.bf16.msra.mxu0 %v906
        %919 = vmatpush.bf16.msra.mxu0 %v905
        %920 = vmatmul.bf16.gmra.mxu0 %v910
        %v921 = vpop.f32.mrf.mxu0
        %v922 = vadd.f32 %v895, %v921
        %v923 = vpop.f32.mrf.mxu0
        %924 = vdwg.mxu0
        %v925 = vadd.f32 %v582, %v922
        %s926 = scalar_lea.vmem [#allocation8], %s39
        %v927 = vld [vmem:[%s926] sm:$0x1]
        %s928 = scalar_lea.vmem %s6, %s39
        %v929 = vld [vmem:[%s928] sm:$0x1]
        %v930 = vsel %vm608, %v925, 0.0
        %931 = vadd.xlane.f32.xlu0 %v930
        %v932 = vpop.xlane.xlu0 %931
        %v933 = vrcp.pop 32.0
        %v934 = vmul.f32 32.0, %v933
        %v935 = vsub.f32 1.0, %v934
        %v936 = vmul.f32 %v933, %v935
        %v937 = vadd.f32 %v933, %v936
        %vm938 = vweird.f32 %v933
        %v939 = vsel %vm938, %v933, %v937
        %v940 = vmul.f32 %v932, %v939
        %v941 = vmul.f32 %v925, %v925
        %v942 = vsel %vm608, %v941, 0.0
        %943 = vadd.xlane.f32.xlu0 %v942
        %v944 = vpop.xlane.xlu0 %943
        %v945 = vmul.f32 %v944, %v939
        %v946 = vmul.f32 %v940, %v940
        %v947 = vsub.f32 %v945, %v946
        %v948 = vsub.f32 %v925, %v940
        %v949 = vadd.f32 %v947, 1e-05
        %v950 = vrsqrt.pop %v949
        %v951 = vmul.f32 %v950, %v949
        %v952 = vmul.f32 %v951, %v950
        %v953 = vmul.f32 0.5, %v952
        %v954 = vsub.f32 1.5, %v953
        %v955 = vmul.f32 %v950, %v954
        %vm956 = vweird.f32 %v949
        %vm957 = vweird.f32 %v950
        %vm958 = vmor %vm956, %vm957
        %v959 = vsel %vm958, %v950, %v955
        %v960 = vmul.f32 %v948, %v959
        %v962 = vperm.slane %v927, 0
        %v964 = vmul.f32 %v960, %v962
        %v966 = vperm.slane %v929, 0
        %v968 = vadd.f32 %v964, %v966
        %v969 = vmax.f32 %v968, 0.0
        %v970 = vpack.c.bf16 %v969, %v969
        %s971 = smul.addr %s584, 4
        %s972 = scalar_lea.vmem %s7, %s971
        %v973 = vld [vmem:[%s972] sm:$0xf]
        %v974 = vld [vmem:[%s972 + $0x4] sm:$0xf]
        %v975 = vld [vmem:[%s972 + $0x8] sm:$0xf]
        %v976 = vld [vmem:[%s972 + $0xc] sm:$0xf]
        %s977 = scalar_lea.vmem %s8, %s39
        %v978 = vld [vmem:[%s977] sm:$0x1]
        %v980 = vperm.slane %v978, 0
        %v986 = vunpack.c.l.b16 %v973
        %v987 = vunpack.c.l.b16 %v974
        %v988 = vunpack.c.l.b16 %v975
        %v989 = vunpack.c.l.b16 %v976
        %v990 = vpack.c.b16 %v987, %v986
        %v991 = vpack.c.b16 %v989, %v988
        %v995 = vsel %vm608, %v970, 0
        %997 = vmatpush.bf16.msra.mxu0 0
        %998 = vmatpush.bf16.msra.mxu0 0
        %999 = vmatpush.bf16.msra.mxu0 0
        %1000 = vmatpush.bf16.msra.mxu0 0
        %1001 = vmatpush.bf16.msra.mxu0 0
        %1002 = vmatpush.bf16.msra.mxu0 0
        %1003 = vmatpush.bf16.msra.mxu0 %v991
        %1004 = vmatpush.bf16.msra.mxu0 %v990
        %1005 = vmatmul.bf16.gmra.mxu0 %v995
        %v1006 = vpop.f32.mrf.mxu0
        %v1007 = vadd.f32 %v980, %v1006
        %v1008 = vpop.f32.mrf.mxu0
        %1009 = vdwg.mxu0
        %v1010 = vmax.f32 %v1007, 0.0
        %v1011 = vpack.c.bf16 %v1010, %v1010
        %s1012 = smul.u32 %s39, 8
        %s1013 = smul.addr %s1012, 4
        %s1014 = scalar_lea.vmem %s9, %s1013
        %v1015 = vld [vmem:[%s1014] sm:$0xf]
        %v1016 = vld [vmem:[%s1014 + $0x4] sm:$0xf]
        %v1017 = vld [vmem:[%s1014 + $0x8] sm:$0xf]
        %v1018 = vld [vmem:[%s1014 + $0xc] sm:$0xf]
        %v1019 = vld [vmem:[%s1014 + $0x10] sm:$0xf]
        %v1020 = vld [vmem:[%s1014 + $0x14] sm:$0xf]
        %v1021 = vld [vmem:[%s1014 + $0x18] sm:$0xf]
        %v1022 = vld [vmem:[%s1014 + $0x1c] sm:$0xf]
        %s1023 = scalar_lea.vmem %s10, %s39
        %v1024 = vld [vmem:[%s1023] sm:$0x1]
        %v1026 = vperm.slane %v1024, 0
        %v1036 = vunpack.c.l.b16 %v1015
        %v1037 = vunpack.c.l.b16 %v1016
        %v1038 = vunpack.c.l.b16 %v1017
        %v1039 = vunpack.c.l.b16 %v1018
        %v1040 = vunpack.c.l.b16 %v1019
        %v1041 = vunpack.c.l.b16 %v1020
        %v1042 = vunpack.c.l.b16 %v1021
        %v1043 = vunpack.c.l.b16 %v1022
        %v1044 = vpack.c.b16 %v1037, %v1036
        %v1045 = vpack.c.b16 %v1039, %v1038
        %v1046 = vpack.c.b16 %v1041, %v1040
        %v1047 = vpack.c.b16 %v1043, %v1042
        %vm1052 = vcmask 523264
        %v1054 = vsel %vm1052, %v1011, 0
        %1056 = vmatpush.bf16.msra.mxu0 0
        %1057 = vmatpush.bf16.msra.mxu0 0
        %1058 = vmatpush.bf16.msra.mxu0 0
        %1059 = vmatpush.bf16.msra.mxu0 0
        %1060 = vmatpush.bf16.msra.mxu0 %v1047
        %1061 = vmatpush.bf16.msra.mxu0 %v1046
        %1062 = vmatpush.bf16.msra.mxu0 %v1045
        %1063 = vmatpush.bf16.msra.mxu0 %v1044
        %1064 = vmatmul.bf16.gmra.mxu0 %v1054
        %v1065 = vpop.f32.mrf.mxu0
        %v1066 = vadd.f32 %v1026, %v1065
        %v1067 = vpop.f32.mrf.mxu0
        %1068 = vdwg.mxu0
        %v1069 = vadd.f32 %v969, %v1066
        %s1070 = scalar_lea.vmem [#allocation9], %s39
        %v1071 = vld [vmem:[%s1070] sm:$0x1]
        %s1072 = scalar_lea.vmem %s12, %s39
        %v1073 = vld [vmem:[%s1072] sm:$0x1]
        %v1074 = vsel %vm608, %v1069, 0.0
        %1075 = vadd.xlane.f32.xlu0 %v1074
        %v1076 = vpop.xlane.xlu0 %1075
        %v1077 = vmul.f32 %v1076, %v939
        %v1078 = vmul.f32 %v1069, %v1069
        %v1079 = vsel %vm608, %v1078, 0.0
        %1080 = vadd.xlane.f32.xlu0 %v1079
        %v1081 = vpop.xlane.xlu0 %1080
        %v1082 = vmul.f32 %v1081, %v939
        %v1083 = vmul.f32 %v1077, %v1077
        %v1084 = vsub.f32 %v1082, %v1083
        %v1085 = vsub.f32 %v1069, %v1077
        %v1086 = vadd.f32 %v1084, 1e-05
        %v1087 = vrsqrt.pop %v1086
        %v1088 = vmul.f32 %v1087, %v1086
        %v1089 = vmul.f32 %v1088, %v1087
        %v1090 = vmul.f32 0.5, %v1089
        %v1091 = vsub.f32 1.5, %v1090
        %v1092 = vmul.f32 %v1087, %v1091
        %vm1093 = vweird.f32 %v1086
        %vm1094 = vweird.f32 %v1087
        %vm1095 = vmor %vm1093, %vm1094
        %v1096 = vsel %vm1095, %v1087, %v1092
        %v1097 = vmul.f32 %v1085, %v1096
        %v1099 = vperm.slane %v1071, 0
        %v1101 = vmul.f32 %v1097, %v1099
        %v1103 = vperm.slane %v1073, 0
        %v1105 = vadd.f32 %v1101, %v1103
        %v1106 = vmax.f32 %v1105, 0.0
        %1107 = vst.msk [vmem:[#allocation2] sm:$0xff] %vm608, %v1106
        %p1108 = scmp.eq.s32.totalorder %s39, 1
        // Predicated region
        $region101: #{tpu_custom_call.1} parent=79 // pred_check
          %p1109 = pneg %p1108
        $region102: #{tpu_custom_call.1} parent=79 // pred_check_branch
          %1111 = sbr.rel (%p1109) target = $region104
        $region103: #{tpu_custom_call.1} parent=79 // pred_region
          %v1112 = vld [vmem:[%s13] sm:$0x1]
          %v1113 = vld [vmem:[%s14] sm:$0x1]
          %v1114 = vsel %vm608, %v1106, 0.0
          %1115 = vadd.xlane.f32.xlu0 %v1114
          %v1116 = vpop.xlane.xlu0 %1115
          %v1117 = vmul.f32 %v1116, %v939
          %v1118 = vmul.f32 %v1106, %v1106
          %v1119 = vsel %vm608, %v1118, 0.0
          %1120 = vadd.xlane.f32.xlu0 %v1119
          %v1121 = vpop.xlane.xlu0 %1120
          %v1122 = vmul.f32 %v1121, %v939
          %v1123 = vmul.f32 %v1117, %v1117
          %v1124 = vsub.f32 %v1122, %v1123
          %v1125 = vsub.f32 %v1106, %v1117
          %v1126 = vadd.f32 %v1124, 1e-05
          %v1127 = vrsqrt.pop %v1126
          %v1128 = vmul.f32 %v1127, %v1126
          %v1129 = vmul.f32 %v1128, %v1127
          %v1130 = vmul.f32 0.5, %v1129
          %v1131 = vsub.f32 1.5, %v1130
          %v1132 = vmul.f32 %v1127, %v1131
          %vm1133 = vweird.f32 %v1126
          %vm1134 = vweird.f32 %v1127
          %vm1135 = vmor %vm1133, %vm1134
          %v1136 = vsel %vm1135, %v1127, %v1132
          %v1137 = vmul.f32 %v1125, %v1136
          %v1139 = vperm.slane %v1112, 0
          %v1141 = vmul.f32 %v1137, %v1139
          %v1143 = vperm.slane %v1113, 0
          %v1145 = vadd.f32 %v1141, %v1143
          %1146 = vst.msk [vmem:[%s573] sm:$0xff] %vm608, %v1145
        $region104: #{tpu_custom_call.1} parent=79 // pred_fallthru
          _
        %s1147 = sand.u32 %s374, 1
        %s1148 = scalar_lea.sflag [#allocation5], %s1147
        %s1149 = sand.u32 %s374, 1
        %s1150 = smul.addr %s1149, 8
        %s1151 = scalar_lea.vmem [#allocation11], %s1150
        // Predicated region
        $region105: #{tpu_custom_call.1} parent=79 // pred_check
          %p1152 = pneg %p384
        $region106: #{tpu_custom_call.1} parent=79 // pred_check_branch
          %1154 = sbr.rel (%p1152) target = $region108
        $region107: #{tpu_custom_call.1} parent=79 // pred_region
          %1156 = vsyncadd %s1148, 0
          %s1157 = smul.addr %s38, 8
          %s1158 = scalar_lea.hbm %s15, %s1157
          %s1160 = sshll.u32 %s1151, 4
          %s1161 = int_to_ptr.vmem [resolvable:$true] %s1160
          %s1162 = sshll.u32 %s1158, 4
          %s1163 = int_to_ptr.hbm [resolvable:$true] %s1162
          %1165 = dma.vmem_to_hbm [thread:$0]  %s1161, 128, %s1163, %s1148
        $region108: #{tpu_custom_call.1} parent=79 // pred_fallthru
          _
      $region80: #{tpu_custom_call.1} parent=5 // pred_fallthru
        _
      %p1166 = scmp.le.s32.totalorder 2, %s29
      // Predicated region
      $region109: #{tpu_custom_call.1} parent=5 // pred_check
        %p1167 = pneg %p1166
      $region110: #{tpu_custom_call.1} parent=5 // pred_check_branch
        %1169 = sbr.rel (%p1167) target = $region112
      $region111: #{tpu_custom_call.1} parent=5 // pred_region
        %s1170 = ssub.s32 %s29, 2
        // Predicated region
        $region113: #{tpu_custom_call.1} parent=111 // pred_check
          %p1171 = pneg %p390
        $region114: #{tpu_custom_call.1} parent=111 // pred_check_branch
          %1173 = sbr.rel (%p1171) target = $region116
        $region115: #{tpu_custom_call.1} parent=111 // pred_region
          %s1174 = sand.u32 %s375, 1
          %s1175 = scalar_lea.sflag [#allocation5], %s1174
          %s1176 = sand.u32 %s375, 1
          %s1177 = smul.addr %s1176, 8
          %s1178 = scalar_lea.vmem [#allocation11], %s1177
          %1180 = dma.done %s1175, 128
        $region116: #{tpu_custom_call.1} parent=111 // pred_fallthru
          _
      $region112: #{tpu_custom_call.1} parent=5 // pred_fallthru
        _
    $region6: #{tpu_custom_call.1} parent=1 // loop_footer
      %s33 = sadd.s32 1, %s29
    $region7: #{tpu_custom_call.1} parent=1 // loop_footer_branch
      %28 = sbr.rel target = $region3
    $region8: #{tpu_custom_call.1} parent=1 // loop_exit
      _
    %1181 = vsyncpa [#allocation4], 1
    %s1182 = scalar_lea.sflag [#allocation4], 1
    %1183 = vsyncpa %s1182, 1
    %1184 = vsyncpa [#allocation7], 1
    %1185 = vsyncpa [#allocation10], 1
    %1186 = vsyncpa [#allocation5], 1
    %s1187 = scalar_lea.sflag [#allocation5], 1
    %1188 = vsyncpa %s1187, 1

</llo_original>
